<compile_context>
chip_gen: v6e
topology: v6e:2x2x1
jax: 0.10.0
libtpu: 0.0.40
codegen_flags: <defaults>
</compile_context>

<pallas_src>
import math
import functools

import jax
import jax.numpy as jnp
from jax import lax
from jax.experimental import pallas as pl
from jax.experimental.pallas import tpu as pltpu


def _round_up(n, m):
    return ((n + m - 1) // m) * m


def _param_layout(S, D):
    """Row offsets of each section in the packed (rows, 5*D) parameter slab.

    Sections are aligned to 8 sublanes so the in-kernel static slices are tile-aligned.
    """
    off_w = 0                               # fused qkv(+rot) weights: (D, 5D)
    off_b = off_w + _round_up(D, 8)         # fused bias:              (1, 5D)
    off_cos = off_b + 8                     # head-tiled cos:          (S, D)
    off_sin = off_cos + _round_up(S, 8)     # head-tiled sin:          (S, D)
    off_wo = off_sin + _round_up(S, 8)      # out-proj weight:         (D, D)
    off_bo = off_wo + _round_up(D, 8)       # out-proj bias:           (1, D)
    rows = off_bo + 8
    return dict(w=off_w, b=off_b, cos=off_cos, sin=off_sin, wo=off_wo, bo=off_bo, rows=rows)


def self_attention_kernel(x_ref, p_ref, o_ref, *, n_heads, batch, seq):
    """Whole (tiny) problem in one grid step.  x_ref: (B*S, D); p_ref: packed params."""
    BS, D = x_ref.shape
    H = n_heads
    dh = D // H
    L = _param_layout(seq, D)
    f32 = jnp.float32

    # ---- carve the packed parameter slab with static, tile-aligned slices (cheap) ----
    w_f = p_ref[L["w"]:L["w"] + D, :]             # (D, 5D) = [q*s | qrot*s | k | krot | v]
    b_f = p_ref[L["b"]:L["b"] + 1, :]             # (1, 5D)
    cos_sd = p_ref[L["cos"]:L["cos"] + seq, :D]   # (S, D)  cos tiled per head
    sin_sd = p_ref[L["sin"]:L["sin"] + seq, :D]   # (S, D)
    w_o = p_ref[L["wo"]:L["wo"] + D, :D]          # (D, D)  original out-proj weight
    b_o = p_ref[L["bo"]:L["bo"] + 1, :D]          # (1, D)

    # ---- single fused projection matmul: (B*S, D) @ (D, 5D) ----
    y = jnp.dot(x_ref[...], w_f, preferred_element_type=f32) + b_f        # (BS, 5D)
    q_base, q_rot, k_base, k_rot, v_all = [y[:, i * D:(i + 1) * D] for i in range(5)]

    # ---- rotary: cos/sin pre-tiled to width D in the wrapper; repeat over batch rows ----
    cos_b = jnp.concatenate([cos_sd] * batch, axis=0)                     # (BS, D)
    sin_b = jnp.concatenate([sin_sd] * batch, axis=0)
    q = q_base * cos_b + q_rot * sin_b     # 1/sqrt(dh) already folded into q-side weights
    k = k_base * cos_b + k_rot * sin_b

    # ---- split heads into a single batch dim (static slices + stack; no transposes) ----
    def split_heads(t):                    # (BS, D) -> (B*H, S, dh), batch order (b, h)
        pieces = [t[b * seq:(b + 1) * seq, h * dh:(h + 1) * dh]
                  for b in range(batch) for h in range(H)]
        return jnp.stack(pieces, axis=0)

    qh, kh, vh = split_heads(q), split_heads(k), split_heads(v_all)

    # ---- attention core: one batched dot_general for scores, one for p @ v ----
    s = lax.dot_general(qh, kh, (((2,), (2,)), ((0,), (0,))),
                        preferred_element_type=f32)                       # (BH, S, S)
    s = s - jnp.max(s, axis=-1, keepdims=True)
    p = jnp.exp(s)
    l = jnp.sum(p, axis=-1, keepdims=True)                                # (BH, S, 1)
    # TODO(synk): attention-prob dropout is identity at inference; mask=None path only.
    ctx = lax.dot_general(p, vh, (((2,), (1,)), ((0,), (0,))),
                          preferred_element_type=f32)                     # (BH, S, dh)
    ctx = ctx * pl.reciprocal(l, approx=False)   # exact: tighter numerics, EUP either way

    # ---- merge heads back to (B*S, D): leading-dim indexing + lane concat ----
    row_blocks = [jnp.concatenate([ctx[b * H + h] for h in range(H)], axis=-1)   # (S, D)
                  for b in range(batch)]
    ctx2d = jnp.concatenate(row_blocks, axis=0)                           # (BS, D)

    # ---- single out-projection matmul with the ORIGINAL weights ----
    out = jnp.dot(ctx2d, w_o, preferred_element_type=f32) + b_o           # (BS, D)
    # TODO(synk): D=16 (<128) stores are lane-masked; present lane-dense (x128) output
    # blocks once D is realistic.
    o_ref[...] = out.astype(o_ref.dtype)


def prepare_self_attention_params(wqkv, bqkv, wout, bout, cos, sin, *, n_heads):
    """One-time (per weight set) parameter prep -- cache the result outside the call path.

    Packs fused qkv(+rotary, +score-scale) weights/bias, head-tiled cos/sin, and the
    out-projection weights/bias into a single f32 slab with 8-row-aligned sections.
    """
    D = wout.shape[0]
    dh = D // n_heads
    S = cos.shape[0]
    half = dh // 2
    if dh != 4:
        # The reference apply_rotary only broadcasts correctly for d_head == 4; the
        # rotary-as-column-permutation fold below reproduces exactly that case.
        raise ValueError("SelfAttention rotary requires d_head == 4")
    scale = 1.0 / math.sqrt(dh)

    # wqkv columns are [q | k | v], each head-major (h, dh).
    wq, wk, wv = wqkv[:, :D], wqkv[:, D:2 * D], wqkv[:, 2 * D:3 * D]
    b_all = bqkv.reshape(3 * D)
    bq, bk, bv = b_all[:D], b_all[D:2 * D], b_all[2 * D:3 * D]

    def rot_cols(t):
        # per-head column permutation + sign: rot(y) = [y2, y3, -y0, -y1]   (d_head == 4)
        t_h = t.reshape(*t.shape[:-1], n_heads, dh)
        r = jnp.concatenate([t_h[..., half:], -t_h[..., :half]], axis=-1)
        return r.reshape(t.shape)

    # Fold the 1/sqrt(d_head) score scale into the q-side weights/biases.
    w_fused = jnp.concatenate(
        [wq * scale, rot_cols(wq) * scale, wk, rot_cols(wk), wv], axis=-1)      # (D, 5D)
    b_fused = jnp.concatenate(
        [bq * scale, rot_cols(bq) * scale, bk, rot_cols(bk), bv], axis=-1)      # (5D,)

    cos_full = jnp.tile(cos, (1, n_heads))                                      # (S, D)
    sin_full = jnp.tile(sin, (1, n_heads))

    L = _param_layout(S, D)
    packed = jnp.zeros((L["rows"], 5 * D), jnp.float32)
    packed = packed.at[L["w"]:L["w"] + D, :].set(w_fused)
    packed = packed.at[L["b"], :].set(b_fused)
    packed = packed.at[L["cos"]:L["cos"] + S, :D].set(cos_full)
    packed = packed.at[L["sin"]:L["sin"] + S, :D].set(sin_full)
    packed = packed.at[L["wo"]:L["wo"] + D, :D].set(wout)
    packed = packed.at[L["bo"], :D].set(bout.reshape(D))
    return packed


def self_attention(x, packed_params, *, n_heads):
    """Per-call path: one (free) reshape + one pallas_call with 2 inputs -> 2 DMAs."""
    B, S, D = x.shape
    L = _param_layout(S, D)
    x2d = x.reshape(B * S, D)

    kernel = functools.partial(self_attention_kernel, n_heads=n_heads, batch=B, seq=S)
    out2d = pl.pallas_call(
        kernel,
        out_shape=jax.ShapeDtypeStruct((B * S, D), x.dtype),
        grid_spec=pltpu.PrefetchScalarGridSpec(
            num_scalar_prefetch=0,
            grid=(1,),                              # whole (tiny) problem in one step
            in_specs=[
                pl.BlockSpec((B * S, D), lambda i: (0, 0)),            # activations
                pl.BlockSpec((L["rows"], 5 * D), lambda i: (0, 0)),    # packed parameters
            ],
            out_specs=pl.BlockSpec((B * S, D), lambda i: (0, 0)),
        ),
        # TODO(synk): at production sizes expose a "parallel" grid axis over B/heads so
        # v7x's second TensorCore is used; a single step is right at this tiny size.
        compiler_params=pltpu.CompilerParams(dimension_semantics=("arbitrary",)),
    )(x2d, packed_params)
    return out2d.reshape(B, S, D)


def rotary_cos_sin(seq_len, d_head, base=10000.0):
    inv_freq = 1.0 / (base ** (jnp.arange(0, d_head, 2, dtype=jnp.float32) / d_head))
    t = jnp.arange(seq_len, dtype=jnp.float32)
    freqs = jnp.einsum('i,j->ij', t, inv_freq)
    emb = jnp.concatenate([freqs, freqs], axis=-1)       # (S, d_head)
    return jnp.cos(emb), jnp.sin(emb)


def reference(x, wqkv, bqkv, wout, bout, cos, sin, n_heads):
    """Pure-JAX mirror of the PyTorch forward (inference, mask=None)."""
    B, S, D = x.shape
    dh = D // n_heads
    qkv = x @ wqkv + bqkv[0]
    q, k, v = jnp.split(qkv, 3, axis=-1)
    q = q.reshape(B, S, n_heads, dh).transpose(0, 2, 1, 3)
    k = k.reshape(B, S, n_heads, dh).transpose(0, 2, 1, 3)
    v = v.reshape(B, S, n_heads, dh).transpose(0, 2, 1, 3)

    def rot(t):   # exact PyTorch semantics (valid for d_head == 4)
        return jnp.concatenate([t[..., dh // 2:], -t[..., :dh // 2]], axis=-1)

    q = q * cos + rot(q) * sin
    k = k * cos + rot(k) * sin
    attn = jnp.einsum('bhqd,bhkd->bhqk', q, k) / math.sqrt(dh)
    attn = jax.nn.softmax(attn, axis=-1)
    out = jnp.einsum('bhqk,bhkd->bhqd', attn, v)
    out = out.transpose(0, 2, 1, 3).reshape(B, S, D)
    return out @ wout + bout[0]


if __name__ == "__main__":
    B, S, dim, n_heads = 2, 8, 16, 4            # d_head = 4 (required by the rotary code)
    d_head = dim // n_heads

    key = jax.random.PRNGKey(0)
    k_x, k_wq, k_bq, k_wo, k_bo = jax.random.split(key, 5)

    x = jax.random.normal(k_x, (B, S, dim), dtype=jnp.float32)

    # Deterministic PyTorch-Linear-style init: U(-1/sqrt(fan_in), 1/sqrt(fan_in))
    bound = 1.0 / math.sqrt(dim)
    wqkv = jax.random.uniform(k_wq, (dim, 3 * dim), jnp.float32, -bound, bound)
    bqkv = jax.random.uniform(k_bq, (1, 3 * dim), jnp.float32, -bound, bound)
    wout = jax.random.uniform(k_wo, (dim, dim), jnp.float32, -bound, bound)
    bout = jax.random.uniform(k_bo, (1, dim), jnp.float32, -bound, bound)

    cos, sin = rotary_cos_sin(S, d_head)

    # One-time parameter prep, hoisted out of the per-call path (cache per weight set).
    packed = jax.block_until_ready(
        prepare_self_attention_params(wqkv, bqkv, wout, bout, cos, sin, n_heads=n_heads))

    attn_fn = jax.jit(functools.partial(self_attention, n_heads=n_heads))
    out = jax.block_until_ready(attn_fn(x, packed))

    ref = reference(x, wqkv, bqkv, wout, bout, cos, sin, n_heads)
    assert out.shape == (B, S, dim)
    # Structural bugs (head/rotary/weight mapping) would produce O(0.1 - 1) errors.
    assert jnp.allclose(out, ref, rtol=1e-2, atol=1e-2), "mismatch vs JAX reference"

    print("KERNEL_OK")
</pallas_src>

<mosaic_0001>
module attributes {stable_mosaic.version = 11 : i64} {
  func.func @self_attention_kernel(%arg0: i32, %arg1: memref<16x16xf32, #tpu.memory_space<vmem>>, %arg2: memref<64x80xf32, #tpu.memory_space<vmem>>, %arg3: memref<16x16xf32, #tpu.memory_space<vmem>>) attributes {dimension_semantics = [#tpu.dimension_semantics<arbitrary>], iteration_bounds = array<i64: 1>, scalar_prefetch = 0 : i64, scratch_operands = 0 : i64, tpu.core_type = #tpu.core_type<tc>, window_params = [{pipeline_mode = #tpu.pipeline_mode<synchronous>, transform_indices = @transform_0, window_bounds = array<i64: 16, 16>}, {pipeline_mode = #tpu.pipeline_mode<synchronous>, transform_indices = @transform_1, window_bounds = array<i64: 64, 80>}, {pipeline_mode = #tpu.pipeline_mode<synchronous>, transform_indices = @transform_2, window_bounds = array<i64: 16, 16>}]} {
    %c0 = arith.constant 0 : index
    %c0_0 = arith.constant 0 : index
    %0 = vector.load %arg2[%c0, %c0_0] : memref<64x80xf32, #tpu.memory_space<vmem>>, vector<16x80xf32>
    %c16 = arith.constant 16 : index
    %c0_1 = arith.constant 0 : index
    %1 = vector.load %arg2[%c16, %c0_1] : memref<64x80xf32, #tpu.memory_space<vmem>>, vector<1x80xf32>
    %c24 = arith.constant 24 : index
    %c0_2 = arith.constant 0 : index
    %2 = vector.load %arg2[%c24, %c0_2] : memref<64x80xf32, #tpu.memory_space<vmem>>, vector<8x16xf32>
    %c32 = arith.constant 32 : index
    %c0_3 = arith.constant 0 : index
    %3 = vector.load %arg2[%c32, %c0_3] : memref<64x80xf32, #tpu.memory_space<vmem>>, vector<8x16xf32>
    %c40 = arith.constant 40 : index
    %c0_4 = arith.constant 0 : index
    %4 = vector.load %arg2[%c40, %c0_4] : memref<64x80xf32, #tpu.memory_space<vmem>>, vector<16x16xf32>
    %c56 = arith.constant 56 : index
    %c0_5 = arith.constant 0 : index
    %5 = vector.load %arg2[%c56, %c0_5] : memref<64x80xf32, #tpu.memory_space<vmem>>, vector<1x16xf32>
    %c0_6 = arith.constant 0 : index
    %c0_7 = arith.constant 0 : index
    %6 = vector.load %arg1[%c0_6, %c0_7] : memref<16x16xf32, #tpu.memory_space<vmem>>, vector<16x16xf32>
    %cst = arith.constant dense<0.000000e+00> : vector<16x80xf32>
    %7 = tpu.matmul %6, %0, %cst {dimension_numbers = #tpu.dot_dimension_numbers<[1], [0], [0], [1], [0, 0, 1, 1], [], []>} : vector<16x16xf32>, vector<16x80xf32>, vector<16x80xf32> -> vector<16x80xf32>
    %8 = vector.broadcast %1 : vector<1x80xf32> to vector<16x80xf32>
    %9 = arith.addf %7, %8 : vector<16x80xf32>
    %10 = vector.extract_strided_slice %9 {offsets = [0, 0], sizes = [16, 16], strides = [1, 1]} : vector<16x80xf32> to vector<16x16xf32>
    %11 = vector.extract_strided_slice %9 {offsets = [0, 16], sizes = [16, 16], strides = [1, 1]} : vector<16x80xf32> to vector<16x16xf32>
    %12 = vector.extract_strided_slice %9 {offsets = [0, 32], sizes = [16, 16], strides = [1, 1]} : vector<16x80xf32> to vector<16x16xf32>
    %13 = vector.extract_strided_slice %9 {offsets = [0, 48], sizes = [16, 16], strides = [1, 1]} : vector<16x80xf32> to vector<16x16xf32>
    %14 = vector.extract_strided_slice %9 {offsets = [0, 64], sizes = [16, 16], strides = [1, 1]} : vector<16x80xf32> to vector<16x16xf32>
    %15 = tpu.concatenate %2, %2 in 0 : vector<8x16xf32>, vector<8x16xf32> -> vector<16x16xf32>
    %16 = tpu.concatenate %3, %3 in 0 : vector<8x16xf32>, vector<8x16xf32> -> vector<16x16xf32>
    %17 = arith.mulf %10, %15 : vector<16x16xf32>
    %18 = arith.mulf %11, %16 : vector<16x16xf32>
    %19 = arith.addf %17, %18 : vector<16x16xf32>
    %20 = arith.mulf %12, %15 : vector<16x16xf32>
    %21 = arith.mulf %13, %16 : vector<16x16xf32>
    %22 = arith.addf %20, %21 : vector<16x16xf32>
    %23 = vector.extract_strided_slice %19 {offsets = [0, 0], sizes = [8, 4], strides = [1, 1]} : vector<16x16xf32> to vector<8x4xf32>
    %24 = vector.extract_strided_slice %19 {offsets = [0, 4], sizes = [8, 4], strides = [1, 1]} : vector<16x16xf32> to vector<8x4xf32>
    %25 = vector.extract_strided_slice %19 {offsets = [0, 8], sizes = [8, 4], strides = [1, 1]} : vector<16x16xf32> to vector<8x4xf32>
    %26 = vector.extract_strided_slice %19 {offsets = [0, 12], sizes = [8, 4], strides = [1, 1]} : vector<16x16xf32> to vector<8x4xf32>
    %27 = vector.extract_strided_slice %19 {offsets = [8, 0], sizes = [8, 4], strides = [1, 1]} : vector<16x16xf32> to vector<8x4xf32>
    %28 = vector.extract_strided_slice %19 {offsets = [8, 4], sizes = [8, 4], strides = [1, 1]} : vector<16x16xf32> to vector<8x4xf32>
    %29 = vector.extract_strided_slice %19 {offsets = [8, 8], sizes = [8, 4], strides = [1, 1]} : vector<16x16xf32> to vector<8x4xf32>
    %30 = vector.extract_strided_slice %19 {offsets = [8, 12], sizes = [8, 4], strides = [1, 1]} : vector<16x16xf32> to vector<8x4xf32>
    %31 = vector.shape_cast %23 : vector<8x4xf32> to vector<1x8x4xf32>
    %32 = vector.shape_cast %24 : vector<8x4xf32> to vector<1x8x4xf32>
    %33 = vector.shape_cast %25 : vector<8x4xf32> to vector<1x8x4xf32>
    %34 = vector.shape_cast %26 : vector<8x4xf32> to vector<1x8x4xf32>
    %35 = vector.shape_cast %27 : vector<8x4xf32> to vector<1x8x4xf32>
    %36 = vector.shape_cast %28 : vector<8x4xf32> to vector<1x8x4xf32>
    %37 = vector.shape_cast %29 : vector<8x4xf32> to vector<1x8x4xf32>
    %38 = vector.shape_cast %30 : vector<8x4xf32> to vector<1x8x4xf32>
    %39 = tpu.concatenate %31, %32, %33, %34, %35, %36, %37, %38 in 0 : vector<1x8x4xf32>, vector<1x8x4xf32>, vector<1x8x4xf32>, vector<1x8x4xf32>, vector<1x8x4xf32>, vector<1x8x4xf32>, vector<1x8x4xf32>, vector<1x8x4xf32> -> vector<8x8x4xf32>
    %40 = vector.extract_strided_slice %22 {offsets = [0, 0], sizes = [8, 4], strides = [1, 1]} : vector<16x16xf32> to vector<8x4xf32>
    %41 = vector.extract_strided_slice %22 {offsets = [0, 4], sizes = [8, 4], strides = [1, 1]} : vector<16x16xf32> to vector<8x4xf32>
    %42 = vector.extract_strided_slice %22 {offsets = [0, 8], sizes = [8, 4], strides = [1, 1]} : vector<16x16xf32> to vector<8x4xf32>
    %43 = vector.extract_strided_slice %22 {offsets = [0, 12], sizes = [8, 4], strides = [1, 1]} : vector<16x16xf32> to vector<8x4xf32>
    %44 = vector.extract_strided_slice %22 {offsets = [8, 0], sizes = [8, 4], strides = [1, 1]} : vector<16x16xf32> to vector<8x4xf32>
    %45 = vector.extract_strided_slice %22 {offsets = [8, 4], sizes = [8, 4], strides = [1, 1]} : vector<16x16xf32> to vector<8x4xf32>
    %46 = vector.extract_strided_slice %22 {offsets = [8, 8], sizes = [8, 4], strides = [1, 1]} : vector<16x16xf32> to vector<8x4xf32>
    %47 = vector.extract_strided_slice %22 {offsets = [8, 12], sizes = [8, 4], strides = [1, 1]} : vector<16x16xf32> to vector<8x4xf32>
    %48 = vector.shape_cast %40 : vector<8x4xf32> to vector<1x8x4xf32>
    %49 = vector.shape_cast %41 : vector<8x4xf32> to vector<1x8x4xf32>
    %50 = vector.shape_cast %42 : vector<8x4xf32> to vector<1x8x4xf32>
    %51 = vector.shape_cast %43 : vector<8x4xf32> to vector<1x8x4xf32>
    %52 = vector.shape_cast %44 : vector<8x4xf32> to vector<1x8x4xf32>
    %53 = vector.shape_cast %45 : vector<8x4xf32> to vector<1x8x4xf32>
    %54 = vector.shape_cast %46 : vector<8x4xf32> to vector<1x8x4xf32>
    %55 = vector.shape_cast %47 : vector<8x4xf32> to vector<1x8x4xf32>
    %56 = tpu.concatenate %48, %49, %50, %51, %52, %53, %54, %55 in 0 : vector<1x8x4xf32>, vector<1x8x4xf32>, vector<1x8x4xf32>, vector<1x8x4xf32>, vector<1x8x4xf32>, vector<1x8x4xf32>, vector<1x8x4xf32>, vector<1x8x4xf32> -> vector<8x8x4xf32>
    %57 = vector.extract_strided_slice %14 {offsets = [0, 0], sizes = [8, 4], strides = [1, 1]} : vector<16x16xf32> to vector<8x4xf32>
    %58 = vector.extract_strided_slice %14 {offsets = [0, 4], sizes = [8, 4], strides = [1, 1]} : vector<16x16xf32> to vector<8x4xf32>
    %59 = vector.extract_strided_slice %14 {offsets = [0, 8], sizes = [8, 4], strides = [1, 1]} : vector<16x16xf32> to vector<8x4xf32>
    %60 = vector.extract_strided_slice %14 {offsets = [0, 12], sizes = [8, 4], strides = [1, 1]} : vector<16x16xf32> to vector<8x4xf32>
    %61 = vector.extract_strided_slice %14 {offsets = [8, 0], sizes = [8, 4], strides = [1, 1]} : vector<16x16xf32> to vector<8x4xf32>
    %62 = vector.extract_strided_slice %14 {offsets = [8, 4], sizes = [8, 4], strides = [1, 1]} : vector<16x16xf32> to vector<8x4xf32>
    %63 = vector.extract_strided_slice %14 {offsets = [8, 8], sizes = [8, 4], strides = [1, 1]} : vector<16x16xf32> to vector<8x4xf32>
    %64 = vector.extract_strided_slice %14 {offsets = [8, 12], sizes = [8, 4], strides = [1, 1]} : vector<16x16xf32> to vector<8x4xf32>
    %65 = vector.shape_cast %57 : vector<8x4xf32> to vector<1x8x4xf32>
    %66 = vector.shape_cast %58 : vector<8x4xf32> to vector<1x8x4xf32>
    %67 = vector.shape_cast %59 : vector<8x4xf32> to vector<1x8x4xf32>
    %68 = vector.shape_cast %60 : vector<8x4xf32> to vector<1x8x4xf32>
    %69 = vector.shape_cast %61 : vector<8x4xf32> to vector<1x8x4xf32>
    %70 = vector.shape_cast %62 : vector<8x4xf32> to vector<1x8x4xf32>
    %71 = vector.shape_cast %63 : vector<8x4xf32> to vector<1x8x4xf32>
    %72 = vector.shape_cast %64 : vector<8x4xf32> to vector<1x8x4xf32>
    %73 = tpu.concatenate %65, %66, %67, %68, %69, %70, %71, %72 in 0 : vector<1x8x4xf32>, vector<1x8x4xf32>, vector<1x8x4xf32>, vector<1x8x4xf32>, vector<1x8x4xf32>, vector<1x8x4xf32>, vector<1x8x4xf32>, vector<1x8x4xf32> -> vector<8x8x4xf32>
    %cst_8 = arith.constant dense<0.000000e+00> : vector<8x8x8xf32>
    %74 = tpu.matmul %39, %56, %cst_8 {dimension_numbers = #tpu.dot_dimension_numbers<[2], [2], [1], [1], [0, 0, 0, 1, 1, 1], [0], [0]>} : vector<8x8x4xf32>, vector<8x8x4xf32>, vector<8x8x8xf32> -> vector<8x8x8xf32>
    %cst_9 = arith.constant dense<0xFF800000> : vector<8x8xf32>
    %75 = vector.multi_reduction <maximumf>, %74, %cst_9 [2] : vector<8x8x8xf32> to vector<8x8xf32>
    %76 = vector.shape_cast %75 : vector<8x8xf32> to vector<8x8x1xf32>
    %77 = vector.broadcast %76 : vector<8x8x1xf32> to vector<8x8x8xf32>
    %78 = arith.subf %74, %77 : vector<8x8x8xf32>
    %79 = math.exp %78 : vector<8x8x8xf32>
    %cst_10 = arith.constant dense<0.000000e+00> : vector<8x8xf32>
    %80 = vector.multi_reduction <add>, %79, %cst_10 [2] : vector<8x8x8xf32> to vector<8x8xf32>
    %81 = vector.shape_cast %80 : vector<8x8xf32> to vector<8x8x1xf32>
    %cst_11 = arith.constant dense<0.000000e+00> : vector<8x8x4xf32>
    %82 = tpu.matmul %79, %73, %cst_11 {dimension_numbers = #tpu.dot_dimension_numbers<[2], [1], [1], [2], [0, 0, 0, 1, 1, 2], [0], [0]>} : vector<8x8x8xf32>, vector<8x8x4xf32>, vector<8x8x4xf32> -> vector<8x8x4xf32>
    %83 = tpu.reciprocal %81 : vector<8x8x1xf32> -> vector<8x8x1xf32>
    %84 = vector.broadcast %83 : vector<8x8x1xf32> to vector<8x8x4xf32>
    %85 = arith.mulf %82, %84 : vector<8x8x4xf32>
    %86 = vector.extract_strided_slice %85 {offsets = [0, 0, 0], sizes = [1, 8, 4], strides = [1, 1, 1]} : vector<8x8x4xf32> to vector<1x8x4xf32>
    %87 = vector.shape_cast %86 : vector<1x8x4xf32> to vector<8x4xf32>
    %88 = vector.extract_strided_slice %85 {offsets = [1, 0, 0], sizes = [1, 8, 4], strides = [1, 1, 1]} : vector<8x8x4xf32> to vector<1x8x4xf32>
    %89 = vector.shape_cast %88 : vector<1x8x4xf32> to vector<8x4xf32>
    %90 = vector.extract_strided_slice %85 {offsets = [2, 0, 0], sizes = [1, 8, 4], strides = [1, 1, 1]} : vector<8x8x4xf32> to vector<1x8x4xf32>
    %91 = vector.shape_cast %90 : vector<1x8x4xf32> to vector<8x4xf32>
    %92 = vector.extract_strided_slice %85 {offsets = [3, 0, 0], sizes = [1, 8, 4], strides = [1, 1, 1]} : vector<8x8x4xf32> to vector<1x8x4xf32>
    %93 = vector.shape_cast %92 : vector<1x8x4xf32> to vector<8x4xf32>
    %94 = tpu.concatenate %87, %89, %91, %93 in 1 : vector<8x4xf32>, vector<8x4xf32>, vector<8x4xf32>, vector<8x4xf32> -> vector<8x16xf32>
    %95 = vector.extract_strided_slice %85 {offsets = [4, 0, 0], sizes = [1, 8, 4], strides = [1, 1, 1]} : vector<8x8x4xf32> to vector<1x8x4xf32>
    %96 = vector.shape_cast %95 : vector<1x8x4xf32> to vector<8x4xf32>
    %97 = vector.extract_strided_slice %85 {offsets = [5, 0, 0], sizes = [1, 8, 4], strides = [1, 1, 1]} : vector<8x8x4xf32> to vector<1x8x4xf32>
    %98 = vector.shape_cast %97 : vector<1x8x4xf32> to vector<8x4xf32>
    %99 = vector.extract_strided_slice %85 {offsets = [6, 0, 0], sizes = [1, 8, 4], strides = [1, 1, 1]} : vector<8x8x4xf32> to vector<1x8x4xf32>
    %100 = vector.shape_cast %99 : vector<1x8x4xf32> to vector<8x4xf32>
    %101 = vector.extract_strided_slice %85 {offsets = [7, 0, 0], sizes = [1, 8, 4], strides = [1, 1, 1]} : vector<8x8x4xf32> to vector<1x8x4xf32>
    %102 = vector.shape_cast %101 : vector<1x8x4xf32> to vector<8x4xf32>
    %103 = tpu.concatenate %96, %98, %100, %102 in 1 : vector<8x4xf32>, vector<8x4xf32>, vector<8x4xf32>, vector<8x4xf32> -> vector<8x16xf32>
    %104 = tpu.concatenate %94, %103 in 0 : vector<8x16xf32>, vector<8x16xf32> -> vector<16x16xf32>
    %cst_12 = arith.constant dense<0.000000e+00> : vector<16x16xf32>
    %105 = tpu.matmul %104, %4, %cst_12 {dimension_numbers = #tpu.dot_dimension_numbers<[1], [0], [0], [1], [0, 0, 1, 1], [], []>} : vector<16x16xf32>, vector<16x16xf32>, vector<16x16xf32> -> vector<16x16xf32>
    %106 = vector.broadcast %5 : vector<1x16xf32> to vector<16x16xf32>
    %107 = arith.addf %105, %106 : vector<16x16xf32>
    %c0_13 = arith.constant 0 : index
    %c0_14 = arith.constant 0 : index
    %108 = vector.load %arg3[%c0_13, %c0_14] : memref<16x16xf32, #tpu.memory_space<vmem>>, vector<16x16xf32>
    tpu.vector_store %arg3[%c0_13, %c0_14], %107 {strides = array<i32>} : memref<16x16xf32, #tpu.memory_space<vmem>>, vector<16x16xf32>,
    return
  }
  func.func @transform_0(%arg0: i32) -> (i32, i32) {
    %c0_i32 = arith.constant 0 : i32
    %c0_i32_0 = arith.constant 0 : i32
    %c0_i32_1 = arith.constant 0 : i32
    return %c0_i32, %c0_i32_0 : i32, i32
  }
  func.func @transform_1(%arg0: i32) -> (i32, i32) {
    %c0_i32 = arith.constant 0 : i32
    %c0_i32_0 = arith.constant 0 : i32
    %c0_i32_1 = arith.constant 0 : i32
    return %c0_i32, %c0_i32_0 : i32, i32
  }
  func.func @transform_2(%arg0: i32) -> (i32, i32) {
    %c0_i32 = arith.constant 0 : i32
    %c0_i32_0 = arith.constant 0 : i32
    %c0_i32_1 = arith.constant 0 : i32
    return %c0_i32, %c0_i32_0 : i32, i32
  }
}

</mosaic_0001>

<llo_original>
// kernel: self_attention.1
$region0: #{self_attention.1}
  #allocation0 [shape = 'u32[]', space=smem, size = 0x4, offset = 0x4, fixed_abs, tag = 'smem constant byte address 0x4 - core index']
  #allocation1 [shape = 'u32[144,128]{1,0:T(1,128)}', space=vmem, size = 0x12000, scoped, tag = 'internal scratch']
  %s0 = inlined_call_operand.hbm [shape: f32[16,16], index: 0, kind: input, shape index: {}]
  %s1 = inlined_call_operand.hbm [shape: f32[64,80], index: 1, kind: input, shape index: {}]
  %s2 = inlined_call_operand.hbm [shape: f32[16,16], index: 2, kind: output, shape index: {}]
  %s3 = sld [smem:[#allocation0]]
  $region26: #{self_attention.1} parent=0
    _
  %s5 = ssub.s32 1, %s3
  %s6 = scalar_select 0, %s5, %s3
  $region1: #{self_attention.1} parent=0
    #allocation2 [shape = 'u8[8192]{0}', space=vmem, size = 0x2000, scoped, tag = 'input window, operand 0, single buffered']
    #allocation3 [shape = 's32[1]{0}', space=sflag, size = 0x4, scoped, tag = 'scoped memory for self_attention.1']
    #allocation4 [shape = 's32[1]{0}', space=sflag, size = 0x4, scoped, tag = 'scoped memory for self_attention.1']
    #allocation5 [shape = 'u8[32768]{0}', space=vmem, size = 0x8000, scoped, tag = 'input window, operand 1, single buffered']
    #allocation6 [shape = 's32[1]{0}', space=sflag, size = 0x4, scoped, tag = 'scoped memory for self_attention.1']
    #allocation7 [shape = 'u8[8192]{0}', space=vmem, size = 0x2000, scoped, tag = 'output window, operand 0, single buffered']
    %7 = vsyncpa [#allocation3], 0
    %8 = vsyncpa [#allocation6], 0
    %9 = vsyncpa [#allocation4], 0
    // Predicated region
    $region2: #{self_attention.1} parent=1 // pred_check
      _
    $region3: #{self_attention.1} parent=1 // pred_check_branch
      %11 = sbr.rel (0) target = $region5
    $region4: #{self_attention.1} parent=1 // pred_region
      %s13 = ssub.s32 256, 256
      %14 = vsyncadd [#allocation3], %s13
      %s15 = sshll.u32 [#allocation2], 4
      %s16 = int_to_ptr.vmem [resolvable:$true] %s15
      %21 = dma.hbm_to_vmem [thread:$0]  %s0, 256, %s16, [#allocation3], 128, 128, 8
    $region5: #{self_attention.1} parent=1 // pred_fallthru
      _
    // Predicated region
    $region6: #{self_attention.1} parent=1 // pred_check
      _
    $region7: #{self_attention.1} parent=1 // pred_check_branch
      %23 = sbr.rel (0) target = $region9
    $region8: #{self_attention.1} parent=1 // pred_region
      %s25 = ssub.s32 1024, 1024
      %26 = vsyncadd [#allocation6], %s25
      %s27 = sshll.u32 [#allocation5], 4
      %s28 = int_to_ptr.vmem [resolvable:$true] %s27
      %33 = dma.hbm_to_vmem [thread:$0]  %s1, 1024, %s28, [#allocation6], 128, 128, 8
    $region9: #{self_attention.1} parent=1 // pred_fallthru
      _
    // Predicated region
    $region10: #{self_attention.1} parent=1 // pred_check
      _
    $region11: #{self_attention.1} parent=1 // pred_check_branch
      %35 = sbr.rel (0) target = $region13
    $region12: #{self_attention.1} parent=1 // pred_region
      %36 = dma.done [#allocation3], 256
    $region13: #{self_attention.1} parent=1 // pred_fallthru
      _
    // Predicated region
    $region14: #{self_attention.1} parent=1 // pred_check
      _
    $region15: #{self_attention.1} parent=1 // pred_check_branch
      %38 = sbr.rel (0) target = $region17
    $region16: #{self_attention.1} parent=1 // pred_region
      %39 = dma.done [#allocation6], 1024
    $region17: #{self_attention.1} parent=1 // pred_fallthru
      _
    %v40 = vld [vmem:[#allocation5] sm:$0xff]
    %v41 = vld [vmem:[#allocation5 + $0x8] sm:$0xff]
    %v42 = vld [vmem:[#allocation5 + $0x10] sm:$0x1]
    %v43 = vld [vmem:[#allocation5 + $0x18] sm:$0xff]
    %v44 = vld [vmem:[#allocation5 + $0x20] sm:$0xff]
    %v45 = vld [vmem:[#allocation5 + $0x28] sm:$0xff]
    %v46 = vld [vmem:[#allocation5 + $0x30] sm:$0xff]
    %v47 = vld [vmem:[#allocation5 + $0x38] sm:$0x1]
    %v48 = vld [vmem:[#allocation2] sm:$0xff]
    %v49 = vld [vmem:[#allocation2 + $0x8] sm:$0xff]
    %v50 = vlaneseq
    %v51 = vshrl.u32 %v50, 7
    %v52 = vsub.s32 0, %v51
    %v53 = vrot.slane %v42, %v52
    %vm54 = vcmask 130048
    %v56 = vsel %vm54, %v48, 0
    %v59 = vsel %vm54, %v49, 0
    %61 = vmatprep.subr.mxu0 0.0
    %62 = vmatpush1.msra.mxu0 0.0
    %63 = vmatprep.subr.mxu0 0.0
    %64 = vmatpush1.msra.mxu0 0.0
    %65 = vmatprep.subr.mxu0 0.0
    %66 = vmatpush1.msra.mxu0 0.0
    %67 = vmatprep.subr.mxu0 0.0
    %68 = vmatpush1.msra.mxu0 0.0
    %69 = vmatprep.subr.mxu0 0.0
    %70 = vmatpush1.msra.mxu0 0.0
    %71 = vmatprep.subr.mxu0 0.0
    %72 = vmatpush1.msra.mxu0 0.0
    %73 = vmatprep.subr.mxu0 0.0
    %74 = vmatpush1.msra.mxu0 0.0
    %75 = vmatprep.subr.mxu0 0.0
    %76 = vmatpush1.msra.mxu0 0.0
    %77 = vmatprep.subr.mxu0 0.0
    %78 = vmatpush1.msra.mxu0 0.0
    %79 = vmatprep.subr.mxu0 0.0
    %80 = vmatpush1.msra.mxu0 0.0
    %81 = vmatprep.subr.mxu0 0.0
    %82 = vmatpush1.msra.mxu0 0.0
    %83 = vmatprep.subr.mxu0 0.0
    %84 = vmatpush1.msra.mxu0 0.0
    %85 = vmatprep.subr.mxu0 0.0
    %86 = vmatpush1.msra.mxu0 0.0
    %87 = vmatprep.subr.mxu0 0.0
    %88 = vmatpush1.msra.mxu0 0.0
    %89 = vmatprep.subr.mxu0 0.0
    %90 = vmatpush1.msra.mxu0 %v41
    %91 = vmatprep.subr.mxu0 0.0
    %92 = vmatpush1.msra.mxu0 %v40
    %93 = vmatprep.subr.mxu0 0.0
    %94 = vmatpush2.msra.mxu0 0.0
    %95 = vmatprep.subr.mxu0 0.0
    %96 = vmatpush2.msra.mxu0 0.0
    %97 = vmatprep.subr.mxu0 0.0
    %98 = vmatpush2.msra.mxu0 0.0
    %99 = vmatprep.subr.mxu0 0.0
    %100 = vmatpush2.msra.mxu0 0.0
    %101 = vmatprep.subr.mxu0 0.0
    %102 = vmatpush2.msra.mxu0 0.0
    %103 = vmatprep.subr.mxu0 0.0
    %104 = vmatpush2.msra.mxu0 0.0
    %105 = vmatprep.subr.mxu0 0.0
    %106 = vmatpush2.msra.mxu0 0.0
    %107 = vmatprep.subr.mxu0 0.0
    %108 = vmatpush2.msra.mxu0 0.0
    %109 = vmatprep.subr.mxu0 0.0
    %110 = vmatpush2.msra.mxu0 0.0
    %111 = vmatprep.subr.mxu0 0.0
    %112 = vmatpush2.msra.mxu0 0.0
    %113 = vmatprep.subr.mxu0 0.0
    %114 = vmatpush2.msra.mxu0 0.0
    %115 = vmatprep.subr.mxu0 0.0
    %116 = vmatpush2.msra.mxu0 0.0
    %117 = vmatprep.subr.mxu0 0.0
    %118 = vmatpush2.msra.mxu0 0.0
    %119 = vmatprep.subr.mxu0 0.0
    %120 = vmatpush2.msra.mxu0 0.0
    %121 = vmatprep.subr.mxu0 0.0
    %122 = vmatpush2.msra.mxu0 0.0
    %123 = vmatprep.subr.mxu0 0.0
    %124 = vmatpush2.msra.mxu0 0.0
    %125 = vmatprep.mubr.f32.mxu0 0.0
    %126 = vmatmul.mubr.f32.gmra.mxu0 %v56
    %v127 = vpop.f32.mrf.mxu0
    %v128 = vadd.f32 %v53, %v127
    %v129 = vpop.f32.mrf.mxu0
    %130 = vmatprep.mubr.f32.mxu0 0.0
    %131 = vmatmul.mubr.f32.gmra.mxu0 %v59
    %v132 = vpop.f32.mrf.mxu0
    %v133 = vadd.f32 %v53, %v132
    %v134 = vpop.f32.mrf.mxu0
    %135 = vdwg.mxu0
    %v136 = vmul.f32 %v128, %v43
    %v137 = vmul.f32 %v133, %v43
    %139 = vrot.lane.b32.xlu0 %v44, 16
    %v140 = vpop.permute.xlu0 %139
    %v142 = vmul.f32 %v128, %v140
    %v143 = vmul.f32 %v133, %v140
    %146 = vrot.lane.b32.xlu0 %v142, 112
    %v147 = vpop.permute.xlu0 %146
    %148 = vrot.lane.b32.xlu0 %v143, 112
    %v149 = vpop.permute.xlu0 %148
    %v152 = vadd.f32 %v136, %v147
    %v153 = vadd.f32 %v137, %v149
    %155 = vrot.lane.b32.xlu0 %v43, 32
    %v156 = vpop.permute.xlu0 %155
    %v158 = vmul.f32 %v128, %v156
    %v159 = vmul.f32 %v133, %v156
    %160 = vrot.lane.b32.xlu0 %v44, 48
    %v161 = vpop.permute.xlu0 %160
    %v163 = vmul.f32 %v128, %v161
    %v164 = vmul.f32 %v133, %v161
    %167 = vrot.lane.b32.xlu0 %v163, 112
    %v168 = vpop.permute.xlu0 %167
    %169 = vrot.lane.b32.xlu0 %v164, 112
    %v170 = vpop.permute.xlu0 %169
    %v173 = vadd.f32 %v158, %v168
    %v174 = vadd.f32 %v159, %v170
    %176 = vrot.lane.b32.xlu0 %v152, 124
    %v177 = vpop.permute.xlu0 %176
    %178 = vrot.lane.b32.xlu0 %v152, 120
    %v179 = vpop.permute.xlu0 %178
    %180 = vrot.lane.b32.xlu0 %v152, 116
    %v181 = vpop.permute.xlu0 %180
    %183 = vrot.lane.b32.xlu0 %v153, 124
    %v184 = vpop.permute.xlu0 %183
    %185 = vrot.lane.b32.xlu0 %v153, 120
    %v186 = vpop.permute.xlu0 %185
    %187 = vrot.lane.b32.xlu0 %v153, 116
    %v188 = vpop.permute.xlu0 %187
    %190 = vrot.lane.b32.xlu0 %v173, 124
    %v191 = vpop.permute.xlu0 %190
    %192 = vrot.lane.b32.xlu0 %v173, 120
    %v193 = vpop.permute.xlu0 %192
    %194 = vrot.lane.b32.xlu0 %v173, 116
    %v195 = vpop.permute.xlu0 %194
    %197 = vrot.lane.b32.xlu0 %v174, 124
    %v198 = vpop.permute.xlu0 %197
    %199 = vrot.lane.b32.xlu0 %v174, 120
    %v200 = vpop.permute.xlu0 %199
    %201 = vrot.lane.b32.xlu0 %v174, 116
    %v202 = vpop.permute.xlu0 %201
    %204 = vrot.lane.b32.xlu0 %v128, 124
    %v205 = vpop.permute.xlu0 %204
    %206 = vrot.lane.b32.xlu0 %v128, 120
    %v207 = vpop.permute.xlu0 %206
    %208 = vrot.lane.b32.xlu0 %v128, 116
    %v209 = vpop.permute.xlu0 %208
    %211 = vrot.lane.b32.xlu0 %v133, 124
    %v212 = vpop.permute.xlu0 %211
    %213 = vrot.lane.b32.xlu0 %v133, 120
    %v214 = vpop.permute.xlu0 %213
    %215 = vrot.lane.b32.xlu0 %v133, 116
    %v216 = vpop.permute.xlu0 %215
    %217 = vrot.lane.b32.xlu0 %v173, 96
    %v218 = vpop.permute.xlu0 %217
    %vm219 = vcmask 31744
    %v220 = vsel %vm219, %v152, 0
    %v222 = vsel %vm219, %v218, 0
    %224 = vmatprep.subr.mxu0 0.0
    %225 = vmatpush1.xpose.msra.mxu0 0.0
    %226 = vmatprep.subr.mxu0 0.0
    %227 = vmatpush1.xpose.msra.mxu0 0.0
    %228 = vmatprep.subr.mxu0 0.0
    %229 = vmatpush1.xpose.msra.mxu0 0.0
    %230 = vmatprep.subr.mxu0 0.0
    %231 = vmatpush1.xpose.msra.mxu0 0.0
    %232 = vmatprep.subr.mxu0 0.0
    %233 = vmatpush1.xpose.msra.mxu0 0.0
    %234 = vmatprep.subr.mxu0 0.0
    %235 = vmatpush1.xpose.msra.mxu0 0.0
    %236 = vmatprep.subr.mxu0 0.0
    %237 = vmatpush1.xpose.msra.mxu0 0.0
    %238 = vmatprep.subr.mxu0 0.0
    %239 = vmatpush1.xpose.msra.mxu0 0.0
    %240 = vmatprep.subr.mxu0 0.0
    %241 = vmatpush1.xpose.msra.mxu0 0.0
    %242 = vmatprep.subr.mxu0 0.0
    %243 = vmatpush1.xpose.msra.mxu0 0.0
    %244 = vmatprep.subr.mxu0 0.0
    %245 = vmatpush1.xpose.msra.mxu0 0.0
    %246 = vmatprep.subr.mxu0 0.0
    %247 = vmatpush1.xpose.msra.mxu0 0.0
    %248 = vmatprep.subr.mxu0 0.0
    %249 = vmatpush1.xpose.msra.mxu0 0.0
    %250 = vmatprep.subr.mxu0 0.0
    %251 = vmatpush1.xpose.msra.mxu0 0.0
    %252 = vmatprep.subr.mxu0 0.0
    %253 = vmatpush1.xpose.msra.mxu0 0.0
    %254 = vmatprep.subr.mxu0 0.0
    %255 = vmatpush1.xpose.msra.mxu0 %v222
    %256 = vmatprep.subr.mxu0 0.0
    %257 = vmatpush2.xpose.msra.mxu0 0.0
    %258 = vmatprep.subr.mxu0 0.0
    %259 = vmatpush2.xpose.msra.mxu0 0.0
    %260 = vmatprep.subr.mxu0 0.0
    %261 = vmatpush2.xpose.msra.mxu0 0.0
    %262 = vmatprep.subr.mxu0 0.0
    %263 = vmatpush2.xpose.msra.mxu0 0.0
    %264 = vmatprep.subr.mxu0 0.0
    %265 = vmatpush2.xpose.msra.mxu0 0.0
    %266 = vmatprep.subr.mxu0 0.0
    %267 = vmatpush2.xpose.msra.mxu0 0.0
    %268 = vmatprep.subr.mxu0 0.0
    %269 = vmatpush2.xpose.msra.mxu0 0.0
    %270 = vmatprep.subr.mxu0 0.0
    %271 = vmatpush2.xpose.msra.mxu0 0.0
    %272 = vmatprep.subr.mxu0 0.0
    %273 = vmatpush2.xpose.msra.mxu0 0.0
    %274 = vmatprep.subr.mxu0 0.0
    %275 = vmatpush2.xpose.msra.mxu0 0.0
    %276 = vmatprep.subr.mxu0 0.0
    %277 = vmatpush2.xpose.msra.mxu0 0.0
    %278 = vmatprep.subr.mxu0 0.0
    %279 = vmatpush2.xpose.msra.mxu0 0.0
    %280 = vmatprep.subr.mxu0 0.0
    %281 = vmatpush2.xpose.msra.mxu0 0.0
    %282 = vmatprep.subr.mxu0 0.0
    %283 = vmatpush2.xpose.msra.mxu0 0.0
    %284 = vmatprep.subr.mxu0 0.0
    %285 = vmatpush2.xpose.msra.mxu0 0.0
    %286 = vmatprep.subr.mxu0 0.0
    %287 = vmatpush2.xpose.msra.mxu0 0.0
    %288 = vmatprep.mubr.f32.mxu0 0.0
    %289 = vmatmul.mubr.f32.gmra.mxu0 %v220
    %v290 = vpop.f32.mrf.mxu0
    %v291 = vadd.f32 0.0, %v290
    %v292 = vpop.f32.mrf.mxu0
    %293 = vdwg.mxu0
    %294 = vrot.lane.b32.xlu0 %v191, 96
    %v295 = vpop.permute.xlu0 %294
    %v296 = vsel %vm219, %v177, 0
    %v298 = vsel %vm219, %v295, 0
    %300 = vmatprep.subr.mxu0 0.0
    %301 = vmatpush1.xpose.msra.mxu0 0.0
    %302 = vmatprep.subr.mxu0 0.0
    %303 = vmatpush1.xpose.msra.mxu0 0.0
    %304 = vmatprep.subr.mxu0 0.0
    %305 = vmatpush1.xpose.msra.mxu0 0.0
    %306 = vmatprep.subr.mxu0 0.0
    %307 = vmatpush1.xpose.msra.mxu0 0.0
    %308 = vmatprep.subr.mxu0 0.0
    %309 = vmatpush1.xpose.msra.mxu0 0.0
    %310 = vmatprep.subr.mxu0 0.0
    %311 = vmatpush1.xpose.msra.mxu0 0.0
    %312 = vmatprep.subr.mxu0 0.0
    %313 = vmatpush1.xpose.msra.mxu0 0.0
    %314 = vmatprep.subr.mxu0 0.0
    %315 = vmatpush1.xpose.msra.mxu0 0.0
    %316 = vmatprep.subr.mxu0 0.0
    %317 = vmatpush1.xpose.msra.mxu0 0.0
    %318 = vmatprep.subr.mxu0 0.0
    %319 = vmatpush1.xpose.msra.mxu0 0.0
    %320 = vmatprep.subr.mxu0 0.0
    %321 = vmatpush1.xpose.msra.mxu0 0.0
    %322 = vmatprep.subr.mxu0 0.0
    %323 = vmatpush1.xpose.msra.mxu0 0.0
    %324 = vmatprep.subr.mxu0 0.0
    %325 = vmatpush1.xpose.msra.mxu0 0.0
    %326 = vmatprep.subr.mxu0 0.0
    %327 = vmatpush1.xpose.msra.mxu0 0.0
    %328 = vmatprep.subr.mxu0 0.0
    %329 = vmatpush1.xpose.msra.mxu0 0.0
    %330 = vmatprep.subr.mxu0 0.0
    %331 = vmatpush1.xpose.msra.mxu0 %v298
    %332 = vmatprep.subr.mxu0 0.0
    %333 = vmatpush2.xpose.msra.mxu0 0.0
    %334 = vmatprep.subr.mxu0 0.0
    %335 = vmatpush2.xpose.msra.mxu0 0.0
    %336 = vmatprep.subr.mxu0 0.0
    %337 = vmatpush2.xpose.msra.mxu0 0.0
    %338 = vmatprep.subr.mxu0 0.0
    %339 = vmatpush2.xpose.msra.mxu0 0.0
    %340 = vmatprep.subr.mxu0 0.0
    %341 = vmatpush2.xpose.msra.mxu0 0.0
    %342 = vmatprep.subr.mxu0 0.0
    %343 = vmatpush2.xpose.msra.mxu0 0.0
    %344 = vmatprep.subr.mxu0 0.0
    %345 = vmatpush2.xpose.msra.mxu0 0.0
    %346 = vmatprep.subr.mxu0 0.0
    %347 = vmatpush2.xpose.msra.mxu0 0.0
    %348 = vmatprep.subr.mxu0 0.0
    %349 = vmatpush2.xpose.msra.mxu0 0.0
    %350 = vmatprep.subr.mxu0 0.0
    %351 = vmatpush2.xpose.msra.mxu0 0.0
    %352 = vmatprep.subr.mxu0 0.0
    %353 = vmatpush2.xpose.msra.mxu0 0.0
    %354 = vmatprep.subr.mxu0 0.0
    %355 = vmatpush2.xpose.msra.mxu0 0.0
    %356 = vmatprep.subr.mxu0 0.0
    %357 = vmatpush2.xpose.msra.mxu0 0.0
    %358 = vmatprep.subr.mxu0 0.0
    %359 = vmatpush2.xpose.msra.mxu0 0.0
    %360 = vmatprep.subr.mxu0 0.0
    %361 = vmatpush2.xpose.msra.mxu0 0.0
    %362 = vmatprep.subr.mxu0 0.0
    %363 = vmatpush2.xpose.msra.mxu0 0.0
    %364 = vmatprep.mubr.f32.mxu0 0.0
    %365 = vmatmul.mubr.f32.gmra.mxu0 %v296
    %v366 = vpop.f32.mrf.mxu0
    %v367 = vadd.f32 0.0, %v366
    %v368 = vpop.f32.mrf.mxu0
    %369 = vdwg.mxu0
    %370 = vrot.lane.b32.xlu0 %v193, 96
    %v371 = vpop.permute.xlu0 %370
    %v372 = vsel %vm219, %v179, 0
    %v374 = vsel %vm219, %v371, 0
    %376 = vmatprep.subr.mxu0 0.0
    %377 = vmatpush1.xpose.msra.mxu0 0.0
    %378 = vmatprep.subr.mxu0 0.0
    %379 = vmatpush1.xpose.msra.mxu0 0.0
    %380 = vmatprep.subr.mxu0 0.0
    %381 = vmatpush1.xpose.msra.mxu0 0.0
    %382 = vmatprep.subr.mxu0 0.0
    %383 = vmatpush1.xpose.msra.mxu0 0.0
    %384 = vmatprep.subr.mxu0 0.0
    %385 = vmatpush1.xpose.msra.mxu0 0.0
    %386 = vmatprep.subr.mxu0 0.0
    %387 = vmatpush1.xpose.msra.mxu0 0.0
    %388 = vmatprep.subr.mxu0 0.0
    %389 = vmatpush1.xpose.msra.mxu0 0.0
    %390 = vmatprep.subr.mxu0 0.0
    %391 = vmatpush1.xpose.msra.mxu0 0.0
    %392 = vmatprep.subr.mxu0 0.0
    %393 = vmatpush1.xpose.msra.mxu0 0.0
    %394 = vmatprep.subr.mxu0 0.0
    %395 = vmatpush1.xpose.msra.mxu0 0.0
    %396 = vmatprep.subr.mxu0 0.0
    %397 = vmatpush1.xpose.msra.mxu0 0.0
    %398 = vmatprep.subr.mxu0 0.0
    %399 = vmatpush1.xpose.msra.mxu0 0.0
    %400 = vmatprep.subr.mxu0 0.0
    %401 = vmatpush1.xpose.msra.mxu0 0.0
    %402 = vmatprep.subr.mxu0 0.0
    %403 = vmatpush1.xpose.msra.mxu0 0.0
    %404 = vmatprep.subr.mxu0 0.0
    %405 = vmatpush1.xpose.msra.mxu0 0.0
    %406 = vmatprep.subr.mxu0 0.0
    %407 = vmatpush1.xpose.msra.mxu0 %v374
    %408 = vmatprep.subr.mxu0 0.0
    %409 = vmatpush2.xpose.msra.mxu0 0.0
    %410 = vmatprep.subr.mxu0 0.0
    %411 = vmatpush2.xpose.msra.mxu0 0.0
    %412 = vmatprep.subr.mxu0 0.0
    %413 = vmatpush2.xpose.msra.mxu0 0.0
    %414 = vmatprep.subr.mxu0 0.0
    %415 = vmatpush2.xpose.msra.mxu0 0.0
    %416 = vmatprep.subr.mxu0 0.0
    %417 = vmatpush2.xpose.msra.mxu0 0.0
    %418 = vmatprep.subr.mxu0 0.0
    %419 = vmatpush2.xpose.msra.mxu0 0.0
    %420 = vmatprep.subr.mxu0 0.0
    %421 = vmatpush2.xpose.msra.mxu0 0.0
    %422 = vmatprep.subr.mxu0 0.0
    %423 = vmatpush2.xpose.msra.mxu0 0.0
    %424 = vmatprep.subr.mxu0 0.0
    %425 = vmatpush2.xpose.msra.mxu0 0.0
    %426 = vmatprep.subr.mxu0 0.0
    %427 = vmatpush2.xpose.msra.mxu0 0.0
    %428 = vmatprep.subr.mxu0 0.0
    %429 = vmatpush2.xpose.msra.mxu0 0.0
    %430 = vmatprep.subr.mxu0 0.0
    %431 = vmatpush2.xpose.msra.mxu0 0.0
    %432 = vmatprep.subr.mxu0 0.0
    %433 = vmatpush2.xpose.msra.mxu0 0.0
    %434 = vmatprep.subr.mxu0 0.0
    %435 = vmatpush2.xpose.msra.mxu0 0.0
    %436 = vmatprep.subr.mxu0 0.0
    %437 = vmatpush2.xpose.msra.mxu0 0.0
    %438 = vmatprep.subr.mxu0 0.0
    %439 = vmatpush2.xpose.msra.mxu0 0.0
    %440 = vmatprep.mubr.f32.mxu0 0.0
    %441 = vmatmul.mubr.f32.gmra.mxu0 %v372
    %v442 = vpop.f32.mrf.mxu0
    %v443 = vadd.f32 0.0, %v442
    %v444 = vpop.f32.mrf.mxu0
    %445 = vdwg.mxu0
    %446 = vrot.lane.b32.xlu0 %v195, 96
    %v447 = vpop.permute.xlu0 %446
    %v448 = vsel %vm219, %v181, 0
    %v450 = vsel %vm219, %v447, 0
    %452 = vmatprep.subr.mxu0 0.0
    %453 = vmatpush1.xpose.msra.mxu0 0.0
    %454 = vmatprep.subr.mxu0 0.0
    %455 = vmatpush1.xpose.msra.mxu0 0.0
    %456 = vmatprep.subr.mxu0 0.0
    %457 = vmatpush1.xpose.msra.mxu0 0.0
    %458 = vmatprep.subr.mxu0 0.0
    %459 = vmatpush1.xpose.msra.mxu0 0.0
    %460 = vmatprep.subr.mxu0 0.0
    %461 = vmatpush1.xpose.msra.mxu0 0.0
    %462 = vmatprep.subr.mxu0 0.0
    %463 = vmatpush1.xpose.msra.mxu0 0.0
    %464 = vmatprep.subr.mxu0 0.0
    %465 = vmatpush1.xpose.msra.mxu0 0.0
    %466 = vmatprep.subr.mxu0 0.0
    %467 = vmatpush1.xpose.msra.mxu0 0.0
    %468 = vmatprep.subr.mxu0 0.0
    %469 = vmatpush1.xpose.msra.mxu0 0.0
    %470 = vmatprep.subr.mxu0 0.0
    %471 = vmatpush1.xpose.msra.mxu0 0.0
    %472 = vmatprep.subr.mxu0 0.0
    %473 = vmatpush1.xpose.msra.mxu0 0.0
    %474 = vmatprep.subr.mxu0 0.0
    %475 = vmatpush1.xpose.msra.mxu0 0.0
    %476 = vmatprep.subr.mxu0 0.0
    %477 = vmatpush1.xpose.msra.mxu0 0.0
    %478 = vmatprep.subr.mxu0 0.0
    %479 = vmatpush1.xpose.msra.mxu0 0.0
    %480 = vmatprep.subr.mxu0 0.0
    %481 = vmatpush1.xpose.msra.mxu0 0.0
    %482 = vmatprep.subr.mxu0 0.0
    %483 = vmatpush1.xpose.msra.mxu0 %v450
    %484 = vmatprep.subr.mxu0 0.0
    %485 = vmatpush2.xpose.msra.mxu0 0.0
    %486 = vmatprep.subr.mxu0 0.0
    %487 = vmatpush2.xpose.msra.mxu0 0.0
    %488 = vmatprep.subr.mxu0 0.0
    %489 = vmatpush2.xpose.msra.mxu0 0.0
    %490 = vmatprep.subr.mxu0 0.0
    %491 = vmatpush2.xpose.msra.mxu0 0.0
    %492 = vmatprep.subr.mxu0 0.0
    %493 = vmatpush2.xpose.msra.mxu0 0.0
    %494 = vmatprep.subr.mxu0 0.0
    %495 = vmatpush2.xpose.msra.mxu0 0.0
    %496 = vmatprep.subr.mxu0 0.0
    %497 = vmatpush2.xpose.msra.mxu0 0.0
    %498 = vmatprep.subr.mxu0 0.0
    %499 = vmatpush2.xpose.msra.mxu0 0.0
    %500 = vmatprep.subr.mxu0 0.0
    %501 = vmatpush2.xpose.msra.mxu0 0.0
    %502 = vmatprep.subr.mxu0 0.0
    %503 = vmatpush2.xpose.msra.mxu0 0.0
    %504 = vmatprep.subr.mxu0 0.0
    %505 = vmatpush2.xpose.msra.mxu0 0.0
    %506 = vmatprep.subr.mxu0 0.0
    %507 = vmatpush2.xpose.msra.mxu0 0.0
    %508 = vmatprep.subr.mxu0 0.0
    %509 = vmatpush2.xpose.msra.mxu0 0.0
    %510 = vmatprep.subr.mxu0 0.0
    %511 = vmatpush2.xpose.msra.mxu0 0.0
    %512 = vmatprep.subr.mxu0 0.0
    %513 = vmatpush2.xpose.msra.mxu0 0.0
    %514 = vmatprep.subr.mxu0 0.0
    %515 = vmatpush2.xpose.msra.mxu0 0.0
    %516 = vmatprep.mubr.f32.mxu0 0.0
    %517 = vmatmul.mubr.f32.gmra.mxu0 %v448
    %v518 = vpop.f32.mrf.mxu0
    %v519 = vadd.f32 0.0, %v518
    %v520 = vpop.f32.mrf.mxu0
    %521 = vdwg.mxu0
    %522 = vrot.lane.b32.xlu0 %v174, 96
    %v523 = vpop.permute.xlu0 %522
    %v524 = vsel %vm219, %v153, 0
    %v526 = vsel %vm219, %v523, 0
    %528 = vmatprep.subr.mxu0 0.0
    %529 = vmatpush1.xpose.msra.mxu0 0.0
    %530 = vmatprep.subr.mxu0 0.0
    %531 = vmatpush1.xpose.msra.mxu0 0.0
    %532 = vmatprep.subr.mxu0 0.0
    %533 = vmatpush1.xpose.msra.mxu0 0.0
    %534 = vmatprep.subr.mxu0 0.0
    %535 = vmatpush1.xpose.msra.mxu0 0.0
    %536 = vmatprep.subr.mxu0 0.0
    %537 = vmatpush1.xpose.msra.mxu0 0.0
    %538 = vmatprep.subr.mxu0 0.0
    %539 = vmatpush1.xpose.msra.mxu0 0.0
    %540 = vmatprep.subr.mxu0 0.0
    %541 = vmatpush1.xpose.msra.mxu0 0.0
    %542 = vmatprep.subr.mxu0 0.0
    %543 = vmatpush1.xpose.msra.mxu0 0.0
    %544 = vmatprep.subr.mxu0 0.0
    %545 = vmatpush1.xpose.msra.mxu0 0.0
    %546 = vmatprep.subr.mxu0 0.0
    %547 = vmatpush1.xpose.msra.mxu0 0.0
    %548 = vmatprep.subr.mxu0 0.0
    %549 = vmatpush1.xpose.msra.mxu0 0.0
    %550 = vmatprep.subr.mxu0 0.0
    %551 = vmatpush1.xpose.msra.mxu0 0.0
    %552 = vmatprep.subr.mxu0 0.0
    %553 = vmatpush1.xpose.msra.mxu0 0.0
    %554 = vmatprep.subr.mxu0 0.0
    %555 = vmatpush1.xpose.msra.mxu0 0.0
    %556 = vmatprep.subr.mxu0 0.0
    %557 = vmatpush1.xpose.msra.mxu0 0.0
    %558 = vmatprep.subr.mxu0 0.0
    %559 = vmatpush1.xpose.msra.mxu0 %v526
    %560 = vmatprep.subr.mxu0 0.0
    %561 = vmatpush2.xpose.msra.mxu0 0.0
    %562 = vmatprep.subr.mxu0 0.0
    %563 = vmatpush2.xpose.msra.mxu0 0.0
    %564 = vmatprep.subr.mxu0 0.0
    %565 = vmatpush2.xpose.msra.mxu0 0.0
    %566 = vmatprep.subr.mxu0 0.0
    %567 = vmatpush2.xpose.msra.mxu0 0.0
    %568 = vmatprep.subr.mxu0 0.0
    %569 = vmatpush2.xpose.msra.mxu0 0.0
    %570 = vmatprep.subr.mxu0 0.0
    %571 = vmatpush2.xpose.msra.mxu0 0.0
    %572 = vmatprep.subr.mxu0 0.0
    %573 = vmatpush2.xpose.msra.mxu0 0.0
    %574 = vmatprep.subr.mxu0 0.0
    %575 = vmatpush2.xpose.msra.mxu0 0.0
    %576 = vmatprep.subr.mxu0 0.0
    %577 = vmatpush2.xpose.msra.mxu0 0.0
    %578 = vmatprep.subr.mxu0 0.0
    %579 = vmatpush2.xpose.msra.mxu0 0.0
    %580 = vmatprep.subr.mxu0 0.0
    %581 = vmatpush2.xpose.msra.mxu0 0.0
    %582 = vmatprep.subr.mxu0 0.0
    %583 = vmatpush2.xpose.msra.mxu0 0.0
    %584 = vmatprep.subr.mxu0 0.0
    %585 = vmatpush2.xpose.msra.mxu0 0.0
    %586 = vmatprep.subr.mxu0 0.0
    %587 = vmatpush2.xpose.msra.mxu0 0.0
    %588 = vmatprep.subr.mxu0 0.0
    %589 = vmatpush2.xpose.msra.mxu0 0.0
    %590 = vmatprep.subr.mxu0 0.0
    %591 = vmatpush2.xpose.msra.mxu0 0.0
    %592 = vmatprep.mubr.f32.mxu0 0.0
    %593 = vmatmul.mubr.f32.gmra.mxu0 %v524
    %v594 = vpop.f32.mrf.mxu0
    %v595 = vadd.f32 0.0, %v594
    %v596 = vpop.f32.mrf.mxu0
    %597 = vdwg.mxu0
    %598 = vrot.lane.b32.xlu0 %v198, 96
    %v599 = vpop.permute.xlu0 %598
    %v600 = vsel %vm219, %v184, 0
    %v602 = vsel %vm219, %v599, 0
    %604 = vmatprep.subr.mxu0 0.0
    %605 = vmatpush1.xpose.msra.mxu0 0.0
    %606 = vmatprep.subr.mxu0 0.0
    %607 = vmatpush1.xpose.msra.mxu0 0.0
    %608 = vmatprep.subr.mxu0 0.0
    %609 = vmatpush1.xpose.msra.mxu0 0.0
    %610 = vmatprep.subr.mxu0 0.0
    %611 = vmatpush1.xpose.msra.mxu0 0.0
    %612 = vmatprep.subr.mxu0 0.0
    %613 = vmatpush1.xpose.msra.mxu0 0.0
    %614 = vmatprep.subr.mxu0 0.0
    %615 = vmatpush1.xpose.msra.mxu0 0.0
    %616 = vmatprep.subr.mxu0 0.0
    %617 = vmatpush1.xpose.msra.mxu0 0.0
    %618 = vmatprep.subr.mxu0 0.0
    %619 = vmatpush1.xpose.msra.mxu0 0.0
    %620 = vmatprep.subr.mxu0 0.0
    %621 = vmatpush1.xpose.msra.mxu0 0.0
    %622 = vmatprep.subr.mxu0 0.0
    %623 = vmatpush1.xpose.msra.mxu0 0.0
    %624 = vmatprep.subr.mxu0 0.0
    %625 = vmatpush1.xpose.msra.mxu0 0.0
    %626 = vmatprep.subr.mxu0 0.0
    %627 = vmatpush1.xpose.msra.mxu0 0.0
    %628 = vmatprep.subr.mxu0 0.0
    %629 = vmatpush1.xpose.msra.mxu0 0.0
    %630 = vmatprep.subr.mxu0 0.0
    %631 = vmatpush1.xpose.msra.mxu0 0.0
    %632 = vmatprep.subr.mxu0 0.0
    %633 = vmatpush1.xpose.msra.mxu0 0.0
    %634 = vmatprep.subr.mxu0 0.0
    %635 = vmatpush1.xpose.msra.mxu0 %v602
    %636 = vmatprep.subr.mxu0 0.0
    %637 = vmatpush2.xpose.msra.mxu0 0.0
    %638 = vmatprep.subr.mxu0 0.0
    %639 = vmatpush2.xpose.msra.mxu0 0.0
    %640 = vmatprep.subr.mxu0 0.0
    %641 = vmatpush2.xpose.msra.mxu0 0.0
    %642 = vmatprep.subr.mxu0 0.0
    %643 = vmatpush2.xpose.msra.mxu0 0.0
    %644 = vmatprep.subr.mxu0 0.0
    %645 = vmatpush2.xpose.msra.mxu0 0.0
    %646 = vmatprep.subr.mxu0 0.0
    %647 = vmatpush2.xpose.msra.mxu0 0.0
    %648 = vmatprep.subr.mxu0 0.0
    %649 = vmatpush2.xpose.msra.mxu0 0.0
    %650 = vmatprep.subr.mxu0 0.0
    %651 = vmatpush2.xpose.msra.mxu0 0.0
    %652 = vmatprep.subr.mxu0 0.0
    %653 = vmatpush2.xpose.msra.mxu0 0.0
    %654 = vmatprep.subr.mxu0 0.0
    %655 = vmatpush2.xpose.msra.mxu0 0.0
    %656 = vmatprep.subr.mxu0 0.0
    %657 = vmatpush2.xpose.msra.mxu0 0.0
    %658 = vmatprep.subr.mxu0 0.0
    %659 = vmatpush2.xpose.msra.mxu0 0.0
    %660 = vmatprep.subr.mxu0 0.0
    %661 = vmatpush2.xpose.msra.mxu0 0.0
    %662 = vmatprep.subr.mxu0 0.0
    %663 = vmatpush2.xpose.msra.mxu0 0.0
    %664 = vmatprep.subr.mxu0 0.0
    %665 = vmatpush2.xpose.msra.mxu0 0.0
    %666 = vmatprep.subr.mxu0 0.0
    %667 = vmatpush2.xpose.msra.mxu0 0.0
    %668 = vmatprep.mubr.f32.mxu0 0.0
    %669 = vmatmul.mubr.f32.gmra.mxu0 %v600
    %v670 = vpop.f32.mrf.mxu0
    %v671 = vadd.f32 0.0, %v670
    %v672 = vpop.f32.mrf.mxu0
    %673 = vdwg.mxu0
    %674 = vrot.lane.b32.xlu0 %v200, 96
    %v675 = vpop.permute.xlu0 %674
    %v676 = vsel %vm219, %v186, 0
    %v678 = vsel %vm219, %v675, 0
    %680 = vmatprep.subr.mxu0 0.0
    %681 = vmatpush1.xpose.msra.mxu0 0.0
    %682 = vmatprep.subr.mxu0 0.0
    %683 = vmatpush1.xpose.msra.mxu0 0.0
    %684 = vmatprep.subr.mxu0 0.0
    %685 = vmatpush1.xpose.msra.mxu0 0.0
    %686 = vmatprep.subr.mxu0 0.0
    %687 = vmatpush1.xpose.msra.mxu0 0.0
    %688 = vmatprep.subr.mxu0 0.0
    %689 = vmatpush1.xpose.msra.mxu0 0.0
    %690 = vmatprep.subr.mxu0 0.0
    %691 = vmatpush1.xpose.msra.mxu0 0.0
    %692 = vmatprep.subr.mxu0 0.0
    %693 = vmatpush1.xpose.msra.mxu0 0.0
    %694 = vmatprep.subr.mxu0 0.0
    %695 = vmatpush1.xpose.msra.mxu0 0.0
    %696 = vmatprep.subr.mxu0 0.0
    %697 = vmatpush1.xpose.msra.mxu0 0.0
    %698 = vmatprep.subr.mxu0 0.0
    %699 = vmatpush1.xpose.msra.mxu0 0.0
    %700 = vmatprep.subr.mxu0 0.0
    %701 = vmatpush1.xpose.msra.mxu0 0.0
    %702 = vmatprep.subr.mxu0 0.0
    %703 = vmatpush1.xpose.msra.mxu0 0.0
    %704 = vmatprep.subr.mxu0 0.0
    %705 = vmatpush1.xpose.msra.mxu0 0.0
    %706 = vmatprep.subr.mxu0 0.0
    %707 = vmatpush1.xpose.msra.mxu0 0.0
    %708 = vmatprep.subr.mxu0 0.0
    %709 = vmatpush1.xpose.msra.mxu0 0.0
    %710 = vmatprep.subr.mxu0 0.0
    %711 = vmatpush1.xpose.msra.mxu0 %v678
    %712 = vmatprep.subr.mxu0 0.0
    %713 = vmatpush2.xpose.msra.mxu0 0.0
    %714 = vmatprep.subr.mxu0 0.0
    %715 = vmatpush2.xpose.msra.mxu0 0.0
    %716 = vmatprep.subr.mxu0 0.0
    %717 = vmatpush2.xpose.msra.mxu0 0.0
    %718 = vmatprep.subr.mxu0 0.0
    %719 = vmatpush2.xpose.msra.mxu0 0.0
    %720 = vmatprep.subr.mxu0 0.0
    %721 = vmatpush2.xpose.msra.mxu0 0.0
    %722 = vmatprep.subr.mxu0 0.0
    %723 = vmatpush2.xpose.msra.mxu0 0.0
    %724 = vmatprep.subr.mxu0 0.0
    %725 = vmatpush2.xpose.msra.mxu0 0.0
    %726 = vmatprep.subr.mxu0 0.0
    %727 = vmatpush2.xpose.msra.mxu0 0.0
    %728 = vmatprep.subr.mxu0 0.0
    %729 = vmatpush2.xpose.msra.mxu0 0.0
    %730 = vmatprep.subr.mxu0 0.0
    %731 = vmatpush2.xpose.msra.mxu0 0.0
    %732 = vmatprep.subr.mxu0 0.0
    %733 = vmatpush2.xpose.msra.mxu0 0.0
    %734 = vmatprep.subr.mxu0 0.0
    %735 = vmatpush2.xpose.msra.mxu0 0.0
    %736 = vmatprep.subr.mxu0 0.0
    %737 = vmatpush2.xpose.msra.mxu0 0.0
    %738 = vmatprep.subr.mxu0 0.0
    %739 = vmatpush2.xpose.msra.mxu0 0.0
    %740 = vmatprep.subr.mxu0 0.0
    %741 = vmatpush2.xpose.msra.mxu0 0.0
    %742 = vmatprep.subr.mxu0 0.0
    %743 = vmatpush2.xpose.msra.mxu0 0.0
    %744 = vmatprep.mubr.f32.mxu0 0.0
    %745 = vmatmul.mubr.f32.gmra.mxu0 %v676
    %v746 = vpop.f32.mrf.mxu0
    %v747 = vadd.f32 0.0, %v746
    %v748 = vpop.f32.mrf.mxu0
    %749 = vdwg.mxu0
    %750 = vrot.lane.b32.xlu0 %v202, 96
    %v751 = vpop.permute.xlu0 %750
    %v752 = vsel %vm219, %v188, 0
    %v754 = vsel %vm219, %v751, 0
    %756 = vmatprep.subr.mxu0 0.0
    %757 = vmatpush1.xpose.msra.mxu0 0.0
    %758 = vmatprep.subr.mxu0 0.0
    %759 = vmatpush1.xpose.msra.mxu0 0.0
    %760 = vmatprep.subr.mxu0 0.0
    %761 = vmatpush1.xpose.msra.mxu0 0.0
    %762 = vmatprep.subr.mxu0 0.0
    %763 = vmatpush1.xpose.msra.mxu0 0.0
    %764 = vmatprep.subr.mxu0 0.0
    %765 = vmatpush1.xpose.msra.mxu0 0.0
    %766 = vmatprep.subr.mxu0 0.0
    %767 = vmatpush1.xpose.msra.mxu0 0.0
    %768 = vmatprep.subr.mxu0 0.0
    %769 = vmatpush1.xpose.msra.mxu0 0.0
    %770 = vmatprep.subr.mxu0 0.0
    %771 = vmatpush1.xpose.msra.mxu0 0.0
    %772 = vmatprep.subr.mxu0 0.0
    %773 = vmatpush1.xpose.msra.mxu0 0.0
    %774 = vmatprep.subr.mxu0 0.0
    %775 = vmatpush1.xpose.msra.mxu0 0.0
    %776 = vmatprep.subr.mxu0 0.0
    %777 = vmatpush1.xpose.msra.mxu0 0.0
    %778 = vmatprep.subr.mxu0 0.0
    %779 = vmatpush1.xpose.msra.mxu0 0.0
    %780 = vmatprep.subr.mxu0 0.0
    %781 = vmatpush1.xpose.msra.mxu0 0.0
    %782 = vmatprep.subr.mxu0 0.0
    %783 = vmatpush1.xpose.msra.mxu0 0.0
    %784 = vmatprep.subr.mxu0 0.0
    %785 = vmatpush1.xpose.msra.mxu0 0.0
    %786 = vmatprep.subr.mxu0 0.0
    %787 = vmatpush1.xpose.msra.mxu0 %v754
    %788 = vmatprep.subr.mxu0 0.0
    %789 = vmatpush2.xpose.msra.mxu0 0.0
    %790 = vmatprep.subr.mxu0 0.0
    %791 = vmatpush2.xpose.msra.mxu0 0.0
    %792 = vmatprep.subr.mxu0 0.0
    %793 = vmatpush2.xpose.msra.mxu0 0.0
    %794 = vmatprep.subr.mxu0 0.0
    %795 = vmatpush2.xpose.msra.mxu0 0.0
    %796 = vmatprep.subr.mxu0 0.0
    %797 = vmatpush2.xpose.msra.mxu0 0.0
    %798 = vmatprep.subr.mxu0 0.0
    %799 = vmatpush2.xpose.msra.mxu0 0.0
    %800 = vmatprep.subr.mxu0 0.0
    %801 = vmatpush2.xpose.msra.mxu0 0.0
    %802 = vmatprep.subr.mxu0 0.0
    %803 = vmatpush2.xpose.msra.mxu0 0.0
    %804 = vmatprep.subr.mxu0 0.0
    %805 = vmatpush2.xpose.msra.mxu0 0.0
    %806 = vmatprep.subr.mxu0 0.0
    %807 = vmatpush2.xpose.msra.mxu0 0.0
    %808 = vmatprep.subr.mxu0 0.0
    %809 = vmatpush2.xpose.msra.mxu0 0.0
    %810 = vmatprep.subr.mxu0 0.0
    %811 = vmatpush2.xpose.msra.mxu0 0.0
    %812 = vmatprep.subr.mxu0 0.0
    %813 = vmatpush2.xpose.msra.mxu0 0.0
    %814 = vmatprep.subr.mxu0 0.0
    %815 = vmatpush2.xpose.msra.mxu0 0.0
    %816 = vmatprep.subr.mxu0 0.0
    %817 = vmatpush2.xpose.msra.mxu0 0.0
    %818 = vmatprep.subr.mxu0 0.0
    %819 = vmatpush2.xpose.msra.mxu0 0.0
    %820 = vmatprep.mubr.f32.mxu0 0.0
    %821 = vmatmul.mubr.f32.gmra.mxu0 %v752
    %v822 = vpop.f32.mrf.mxu0
    %v823 = vadd.f32 0.0, %v822
    %v824 = vpop.f32.mrf.mxu0
    %825 = vdwg.mxu0
    %vm826 = vcmask 64512
    %v827 = vsel %vm826, %v291, -inf
    %828 = vmax.xlane.f32.xlu0 %v827
    %v829 = vpop.xlane.xlu0 %828
    %v830 = vsel %vm826, %v367, -inf
    %831 = vmax.xlane.f32.xlu0 %v830
    %v832 = vpop.xlane.xlu0 %831
    %v833 = vsel %vm826, %v443, -inf
    %834 = vmax.xlane.f32.xlu0 %v833
    %v835 = vpop.xlane.xlu0 %834
    %v836 = vsel %vm826, %v519, -inf
    %837 = vmax.xlane.f32.xlu0 %v836
    %v838 = vpop.xlane.xlu0 %837
    %v839 = vsel %vm826, %v595, -inf
    %840 = vmax.xlane.f32.xlu0 %v839
    %v841 = vpop.xlane.xlu0 %840
    %v842 = vsel %vm826, %v671, -inf
    %843 = vmax.xlane.f32.xlu0 %v842
    %v844 = vpop.xlane.xlu0 %843
    %v845 = vsel %vm826, %v747, -inf
    %846 = vmax.xlane.f32.xlu0 %v845
    %v847 = vpop.xlane.xlu0 %846
    %v848 = vsel %vm826, %v823, -inf
    %849 = vmax.xlane.f32.xlu0 %v848
    %v850 = vpop.xlane.xlu0 %849
    %v851 = vsub.f32 %v291, %v829
    %v852 = vsub.f32 %v367, %v832
    %v853 = vsub.f32 %v443, %v835
    %v854 = vsub.f32 %v519, %v838
    %v855 = vsub.f32 %v595, %v841
    %v856 = vsub.f32 %v671, %v844
    %v857 = vsub.f32 %v747, %v847
    %v858 = vsub.f32 %v823, %v850
    %v859 = vmul.f32 %v851, 1.442695
    %v860 = vpow.pop %v859
    %v861 = vmul.f32 %v852, 1.442695
    %v862 = vpow.pop %v861
    %v863 = vmul.f32 %v853, 1.442695
    %v864 = vpow.pop %v863
    %v865 = vmul.f32 %v854, 1.442695
    %v866 = vpow.pop %v865
    %v867 = vmul.f32 %v855, 1.442695
    %v868 = vpow.pop %v867
    %v869 = vmul.f32 %v856, 1.442695
    %v870 = vpow.pop %v869
    %v871 = vmul.f32 %v857, 1.442695
    %v872 = vpow.pop %v871
    %v873 = vmul.f32 %v858, 1.442695
    %v874 = vpow.pop %v873
    %v875 = vsel %vm826, %v860, 0.0
    %876 = vadd.xlane.f32.xlu0 %v875
    %v877 = vpop.xlane.xlu0 %876
    %v878 = vsel %vm826, %v862, 0.0
    %879 = vadd.xlane.f32.xlu0 %v878
    %v880 = vpop.xlane.xlu0 %879
    %v881 = vsel %vm826, %v864, 0.0
    %882 = vadd.xlane.f32.xlu0 %v881
    %v883 = vpop.xlane.xlu0 %882
    %v884 = vsel %vm826, %v866, 0.0
    %885 = vadd.xlane.f32.xlu0 %v884
    %v886 = vpop.xlane.xlu0 %885
    %v887 = vsel %vm826, %v868, 0.0
    %888 = vadd.xlane.f32.xlu0 %v887
    %v889 = vpop.xlane.xlu0 %888
    %v890 = vsel %vm826, %v870, 0.0
    %891 = vadd.xlane.f32.xlu0 %v890
    %v892 = vpop.xlane.xlu0 %891
    %v893 = vsel %vm826, %v872, 0.0
    %894 = vadd.xlane.f32.xlu0 %v893
    %v895 = vpop.xlane.xlu0 %894
    %v896 = vsel %vm826, %v874, 0.0
    %897 = vadd.xlane.f32.xlu0 %v896
    %v898 = vpop.xlane.xlu0 %897
    %899 = vrot.lane.b32.xlu0 %v128, 64
    %v900 = vpop.permute.xlu0 %899
    %v903 = vsel %vm826, %v860, 0
    %905 = vmatprep.subr.mxu0 0.0
    %906 = vmatpush1.msra.mxu0 0.0
    %907 = vmatprep.subr.mxu0 0.0
    %908 = vmatpush1.msra.mxu0 0.0
    %909 = vmatprep.subr.mxu0 0.0
    %910 = vmatpush1.msra.mxu0 0.0
    %911 = vmatprep.subr.mxu0 0.0
    %912 = vmatpush1.msra.mxu0 0.0
    %913 = vmatprep.subr.mxu0 0.0
    %914 = vmatpush1.msra.mxu0 0.0
    %915 = vmatprep.subr.mxu0 0.0
    %916 = vmatpush1.msra.mxu0 0.0
    %917 = vmatprep.subr.mxu0 0.0
    %918 = vmatpush1.msra.mxu0 0.0
    %919 = vmatprep.subr.mxu0 0.0
    %920 = vmatpush1.msra.mxu0 0.0
    %921 = vmatprep.subr.mxu0 0.0
    %922 = vmatpush1.msra.mxu0 0.0
    %923 = vmatprep.subr.mxu0 0.0
    %924 = vmatpush1.msra.mxu0 0.0
    %925 = vmatprep.subr.mxu0 0.0
    %926 = vmatpush1.msra.mxu0 0.0
    %927 = vmatprep.subr.mxu0 0.0
    %928 = vmatpush1.msra.mxu0 0.0
    %929 = vmatprep.subr.mxu0 0.0
    %930 = vmatpush1.msra.mxu0 0.0
    %931 = vmatprep.subr.mxu0 0.0
    %932 = vmatpush1.msra.mxu0 0.0
    %933 = vmatprep.subr.mxu0 0.0
    %934 = vmatpush1.msra.mxu0 0.0
    %935 = vmatprep.subr.mxu0 0.0
    %936 = vmatpush1.msra.mxu0 %v900
    %937 = vmatprep.subr.mxu0 0.0
    %938 = vmatpush2.msra.mxu0 0.0
    %939 = vmatprep.subr.mxu0 0.0
    %940 = vmatpush2.msra.mxu0 0.0
    %941 = vmatprep.subr.mxu0 0.0
    %942 = vmatpush2.msra.mxu0 0.0
    %943 = vmatprep.subr.mxu0 0.0
    %944 = vmatpush2.msra.mxu0 0.0
    %945 = vmatprep.subr.mxu0 0.0
    %946 = vmatpush2.msra.mxu0 0.0
    %947 = vmatprep.subr.mxu0 0.0
    %948 = vmatpush2.msra.mxu0 0.0
    %949 = vmatprep.subr.mxu0 0.0
    %950 = vmatpush2.msra.mxu0 0.0
    %951 = vmatprep.subr.mxu0 0.0
    %952 = vmatpush2.msra.mxu0 0.0
    %953 = vmatprep.subr.mxu0 0.0
    %954 = vmatpush2.msra.mxu0 0.0
    %955 = vmatprep.subr.mxu0 0.0
    %956 = vmatpush2.msra.mxu0 0.0
    %957 = vmatprep.subr.mxu0 0.0
    %958 = vmatpush2.msra.mxu0 0.0
    %959 = vmatprep.subr.mxu0 0.0
    %960 = vmatpush2.msra.mxu0 0.0
    %961 = vmatprep.subr.mxu0 0.0
    %962 = vmatpush2.msra.mxu0 0.0
    %963 = vmatprep.subr.mxu0 0.0
    %964 = vmatpush2.msra.mxu0 0.0
    %965 = vmatprep.subr.mxu0 0.0
    %966 = vmatpush2.msra.mxu0 0.0
    %967 = vmatprep.subr.mxu0 0.0
    %968 = vmatpush2.msra.mxu0 0.0
    %969 = vmatprep.mubr.f32.mxu0 0.0
    %970 = vmatmul.mubr.f32.gmra.mxu0 %v903
    %v971 = vpop.f32.mrf.mxu0
    %v972 = vadd.f32 0.0, %v971
    %v973 = vpop.f32.mrf.mxu0
    %974 = vdwg.mxu0
    %975 = vrot.lane.b32.xlu0 %v205, 64
    %v976 = vpop.permute.xlu0 %975
    %v979 = vsel %vm826, %v862, 0
    %981 = vmatprep.subr.mxu0 0.0
    %982 = vmatpush1.msra.mxu0 0.0
    %983 = vmatprep.subr.mxu0 0.0
    %984 = vmatpush1.msra.mxu0 0.0
    %985 = vmatprep.subr.mxu0 0.0
    %986 = vmatpush1.msra.mxu0 0.0
    %987 = vmatprep.subr.mxu0 0.0
    %988 = vmatpush1.msra.mxu0 0.0
    %989 = vmatprep.subr.mxu0 0.0
    %990 = vmatpush1.msra.mxu0 0.0
    %991 = vmatprep.subr.mxu0 0.0
    %992 = vmatpush1.msra.mxu0 0.0
    %993 = vmatprep.subr.mxu0 0.0
    %994 = vmatpush1.msra.mxu0 0.0
    %995 = vmatprep.subr.mxu0 0.0
    %996 = vmatpush1.msra.mxu0 0.0
    %997 = vmatprep.subr.mxu0 0.0
    %998 = vmatpush1.msra.mxu0 0.0
    %999 = vmatprep.subr.mxu0 0.0
    %1000 = vmatpush1.msra.mxu0 0.0
    %1001 = vmatprep.subr.mxu0 0.0
    %1002 = vmatpush1.msra.mxu0 0.0
    %1003 = vmatprep.subr.mxu0 0.0
    %1004 = vmatpush1.msra.mxu0 0.0
    %1005 = vmatprep.subr.mxu0 0.0
    %1006 = vmatpush1.msra.mxu0 0.0
    %1007 = vmatprep.subr.mxu0 0.0
    %1008 = vmatpush1.msra.mxu0 0.0
    %1009 = vmatprep.subr.mxu0 0.0
    %1010 = vmatpush1.msra.mxu0 0.0
    %1011 = vmatprep.subr.mxu0 0.0
    %1012 = vmatpush1.msra.mxu0 %v976
    %1013 = vmatprep.subr.mxu0 0.0
    %1014 = vmatpush2.msra.mxu0 0.0
    %1015 = vmatprep.subr.mxu0 0.0
    %1016 = vmatpush2.msra.mxu0 0.0
    %1017 = vmatprep.subr.mxu0 0.0
    %1018 = vmatpush2.msra.mxu0 0.0
    %1019 = vmatprep.subr.mxu0 0.0
    %1020 = vmatpush2.msra.mxu0 0.0
    %1021 = vmatprep.subr.mxu0 0.0
    %1022 = vmatpush2.msra.mxu0 0.0
    %1023 = vmatprep.subr.mxu0 0.0
    %1024 = vmatpush2.msra.mxu0 0.0
    %1025 = vmatprep.subr.mxu0 0.0
    %1026 = vmatpush2.msra.mxu0 0.0
    %1027 = vmatprep.subr.mxu0 0.0
    %1028 = vmatpush2.msra.mxu0 0.0
    %1029 = vmatprep.subr.mxu0 0.0
    %1030 = vmatpush2.msra.mxu0 0.0
    %1031 = vmatprep.subr.mxu0 0.0
    %1032 = vmatpush2.msra.mxu0 0.0
    %1033 = vmatprep.subr.mxu0 0.0
    %1034 = vmatpush2.msra.mxu0 0.0
    %1035 = vmatprep.subr.mxu0 0.0
    %1036 = vmatpush2.msra.mxu0 0.0
    %1037 = vmatprep.subr.mxu0 0.0
    %1038 = vmatpush2.msra.mxu0 0.0
    %1039 = vmatprep.subr.mxu0 0.0
    %1040 = vmatpush2.msra.mxu0 0.0
    %1041 = vmatprep.subr.mxu0 0.0
    %1042 = vmatpush2.msra.mxu0 0.0
    %1043 = vmatprep.subr.mxu0 0.0
    %1044 = vmatpush2.msra.mxu0 0.0
    %1045 = vmatprep.mubr.f32.mxu0 0.0
    %1046 = vmatmul.mubr.f32.gmra.mxu0 %v979
    %v1047 = vpop.f32.mrf.mxu0
    %v1048 = vadd.f32 0.0, %v1047
    %v1049 = vpop.f32.mrf.mxu0
    %1050 = vdwg.mxu0
    %1051 = vrot.lane.b32.xlu0 %v207, 64
    %v1052 = vpop.permute.xlu0 %1051
    %v1055 = vsel %vm826, %v864, 0
    %1057 = vmatprep.subr.mxu0 0.0
    %1058 = vmatpush1.msra.mxu0 0.0
    %1059 = vmatprep.subr.mxu0 0.0
    %1060 = vmatpush1.msra.mxu0 0.0
    %1061 = vmatprep.subr.mxu0 0.0
    %1062 = vmatpush1.msra.mxu0 0.0
    %1063 = vmatprep.subr.mxu0 0.0
    %1064 = vmatpush1.msra.mxu0 0.0
    %1065 = vmatprep.subr.mxu0 0.0
    %1066 = vmatpush1.msra.mxu0 0.0
    %1067 = vmatprep.subr.mxu0 0.0
    %1068 = vmatpush1.msra.mxu0 0.0
    %1069 = vmatprep.subr.mxu0 0.0
    %1070 = vmatpush1.msra.mxu0 0.0
    %1071 = vmatprep.subr.mxu0 0.0
    %1072 = vmatpush1.msra.mxu0 0.0
    %1073 = vmatprep.subr.mxu0 0.0
    %1074 = vmatpush1.msra.mxu0 0.0
    %1075 = vmatprep.subr.mxu0 0.0
    %1076 = vmatpush1.msra.mxu0 0.0
    %1077 = vmatprep.subr.mxu0 0.0
    %1078 = vmatpush1.msra.mxu0 0.0
    %1079 = vmatprep.subr.mxu0 0.0
    %1080 = vmatpush1.msra.mxu0 0.0
    %1081 = vmatprep.subr.mxu0 0.0
    %1082 = vmatpush1.msra.mxu0 0.0
    %1083 = vmatprep.subr.mxu0 0.0
    %1084 = vmatpush1.msra.mxu0 0.0
    %1085 = vmatprep.subr.mxu0 0.0
    %1086 = vmatpush1.msra.mxu0 0.0
    %1087 = vmatprep.subr.mxu0 0.0
    %1088 = vmatpush1.msra.mxu0 %v1052
    %1089 = vmatprep.subr.mxu0 0.0
    %1090 = vmatpush2.msra.mxu0 0.0
    %1091 = vmatprep.subr.mxu0 0.0
    %1092 = vmatpush2.msra.mxu0 0.0
    %1093 = vmatprep.subr.mxu0 0.0
    %1094 = vmatpush2.msra.mxu0 0.0
    %1095 = vmatprep.subr.mxu0 0.0
    %1096 = vmatpush2.msra.mxu0 0.0
    %1097 = vmatprep.subr.mxu0 0.0
    %1098 = vmatpush2.msra.mxu0 0.0
    %1099 = vmatprep.subr.mxu0 0.0
    %1100 = vmatpush2.msra.mxu0 0.0
    %1101 = vmatprep.subr.mxu0 0.0
    %1102 = vmatpush2.msra.mxu0 0.0
    %1103 = vmatprep.subr.mxu0 0.0
    %1104 = vmatpush2.msra.mxu0 0.0
    %1105 = vmatprep.subr.mxu0 0.0
    %1106 = vmatpush2.msra.mxu0 0.0
    %1107 = vmatprep.subr.mxu0 0.0
    %1108 = vmatpush2.msra.mxu0 0.0
    %1109 = vmatprep.subr.mxu0 0.0
    %1110 = vmatpush2.msra.mxu0 0.0
    %1111 = vmatprep.subr.mxu0 0.0
    %1112 = vmatpush2.msra.mxu0 0.0
    %1113 = vmatprep.subr.mxu0 0.0
    %1114 = vmatpush2.msra.mxu0 0.0
    %1115 = vmatprep.subr.mxu0 0.0
    %1116 = vmatpush2.msra.mxu0 0.0
    %1117 = vmatprep.subr.mxu0 0.0
    %1118 = vmatpush2.msra.mxu0 0.0
    %1119 = vmatprep.subr.mxu0 0.0
    %1120 = vmatpush2.msra.mxu0 0.0
    %1121 = vmatprep.mubr.f32.mxu0 0.0
    %1122 = vmatmul.mubr.f32.gmra.mxu0 %v1055
    %v1123 = vpop.f32.mrf.mxu0
    %v1124 = vadd.f32 0.0, %v1123
    %v1125 = vpop.f32.mrf.mxu0
    %1126 = vdwg.mxu0
    %1127 = vrot.lane.b32.xlu0 %v209, 64
    %v1128 = vpop.permute.xlu0 %1127
    %v1131 = vsel %vm826, %v866, 0
    %1133 = vmatprep.subr.mxu0 0.0
    %1134 = vmatpush1.msra.mxu0 0.0
    %1135 = vmatprep.subr.mxu0 0.0
    %1136 = vmatpush1.msra.mxu0 0.0
    %1137 = vmatprep.subr.mxu0 0.0
    %1138 = vmatpush1.msra.mxu0 0.0
    %1139 = vmatprep.subr.mxu0 0.0
    %1140 = vmatpush1.msra.mxu0 0.0
    %1141 = vmatprep.subr.mxu0 0.0
    %1142 = vmatpush1.msra.mxu0 0.0
    %1143 = vmatprep.subr.mxu0 0.0
    %1144 = vmatpush1.msra.mxu0 0.0
    %1145 = vmatprep.subr.mxu0 0.0
    %1146 = vmatpush1.msra.mxu0 0.0
    %1147 = vmatprep.subr.mxu0 0.0
    %1148 = vmatpush1.msra.mxu0 0.0
    %1149 = vmatprep.subr.mxu0 0.0
    %1150 = vmatpush1.msra.mxu0 0.0
    %1151 = vmatprep.subr.mxu0 0.0
    %1152 = vmatpush1.msra.mxu0 0.0
    %1153 = vmatprep.subr.mxu0 0.0
    %1154 = vmatpush1.msra.mxu0 0.0
    %1155 = vmatprep.subr.mxu0 0.0
    %1156 = vmatpush1.msra.mxu0 0.0
    %1157 = vmatprep.subr.mxu0 0.0
    %1158 = vmatpush1.msra.mxu0 0.0
    %1159 = vmatprep.subr.mxu0 0.0
    %1160 = vmatpush1.msra.mxu0 0.0
    %1161 = vmatprep.subr.mxu0 0.0
    %1162 = vmatpush1.msra.mxu0 0.0
    %1163 = vmatprep.subr.mxu0 0.0
    %1164 = vmatpush1.msra.mxu0 %v1128
    %1165 = vmatprep.subr.mxu0 0.0
    %1166 = vmatpush2.msra.mxu0 0.0
    %1167 = vmatprep.subr.mxu0 0.0
    %1168 = vmatpush2.msra.mxu0 0.0
    %1169 = vmatprep.subr.mxu0 0.0
    %1170 = vmatpush2.msra.mxu0 0.0
    %1171 = vmatprep.subr.mxu0 0.0
    %1172 = vmatpush2.msra.mxu0 0.0
    %1173 = vmatprep.subr.mxu0 0.0
    %1174 = vmatpush2.msra.mxu0 0.0
    %1175 = vmatprep.subr.mxu0 0.0
    %1176 = vmatpush2.msra.mxu0 0.0
    %1177 = vmatprep.subr.mxu0 0.0
    %1178 = vmatpush2.msra.mxu0 0.0
    %1179 = vmatprep.subr.mxu0 0.0
    %1180 = vmatpush2.msra.mxu0 0.0
    %1181 = vmatprep.subr.mxu0 0.0
    %1182 = vmatpush2.msra.mxu0 0.0
    %1183 = vmatprep.subr.mxu0 0.0
    %1184 = vmatpush2.msra.mxu0 0.0
    %1185 = vmatprep.subr.mxu0 0.0
    %1186 = vmatpush2.msra.mxu0 0.0
    %1187 = vmatprep.subr.mxu0 0.0
    %1188 = vmatpush2.msra.mxu0 0.0
    %1189 = vmatprep.subr.mxu0 0.0
    %1190 = vmatpush2.msra.mxu0 0.0
    %1191 = vmatprep.subr.mxu0 0.0
    %1192 = vmatpush2.msra.mxu0 0.0
    %1193 = vmatprep.subr.mxu0 0.0
    %1194 = vmatpush2.msra.mxu0 0.0
    %1195 = vmatprep.subr.mxu0 0.0
    %1196 = vmatpush2.msra.mxu0 0.0
    %1197 = vmatprep.mubr.f32.mxu0 0.0
    %1198 = vmatmul.mubr.f32.gmra.mxu0 %v1131
    %v1199 = vpop.f32.mrf.mxu0
    %v1200 = vadd.f32 0.0, %v1199
    %v1201 = vpop.f32.mrf.mxu0
    %1202 = vdwg.mxu0
    %1203 = vrot.lane.b32.xlu0 %v133, 64
    %v1204 = vpop.permute.xlu0 %1203
    %v1207 = vsel %vm826, %v868, 0
    %1209 = vmatprep.subr.mxu0 0.0
    %1210 = vmatpush1.msra.mxu0 0.0
    %1211 = vmatprep.subr.mxu0 0.0
    %1212 = vmatpush1.msra.mxu0 0.0
    %1213 = vmatprep.subr.mxu0 0.0
    %1214 = vmatpush1.msra.mxu0 0.0
    %1215 = vmatprep.subr.mxu0 0.0
    %1216 = vmatpush1.msra.mxu0 0.0
    %1217 = vmatprep.subr.mxu0 0.0
    %1218 = vmatpush1.msra.mxu0 0.0
    %1219 = vmatprep.subr.mxu0 0.0
    %1220 = vmatpush1.msra.mxu0 0.0
    %1221 = vmatprep.subr.mxu0 0.0
    %1222 = vmatpush1.msra.mxu0 0.0
    %1223 = vmatprep.subr.mxu0 0.0
    %1224 = vmatpush1.msra.mxu0 0.0
    %1225 = vmatprep.subr.mxu0 0.0
    %1226 = vmatpush1.msra.mxu0 0.0
    %1227 = vmatprep.subr.mxu0 0.0
    %1228 = vmatpush1.msra.mxu0 0.0
    %1229 = vmatprep.subr.mxu0 0.0
    %1230 = vmatpush1.msra.mxu0 0.0
    %1231 = vmatprep.subr.mxu0 0.0
    %1232 = vmatpush1.msra.mxu0 0.0
    %1233 = vmatprep.subr.mxu0 0.0
    %1234 = vmatpush1.msra.mxu0 0.0
    %1235 = vmatprep.subr.mxu0 0.0
    %1236 = vmatpush1.msra.mxu0 0.0
    %1237 = vmatprep.subr.mxu0 0.0
    %1238 = vmatpush1.msra.mxu0 0.0
    %1239 = vmatprep.subr.mxu0 0.0
    %1240 = vmatpush1.msra.mxu0 %v1204
    %1241 = vmatprep.subr.mxu0 0.0
    %1242 = vmatpush2.msra.mxu0 0.0
    %1243 = vmatprep.subr.mxu0 0.0
    %1244 = vmatpush2.msra.mxu0 0.0
    %1245 = vmatprep.subr.mxu0 0.0
    %1246 = vmatpush2.msra.mxu0 0.0
    %1247 = vmatprep.subr.mxu0 0.0
    %1248 = vmatpush2.msra.mxu0 0.0
    %1249 = vmatprep.subr.mxu0 0.0
    %1250 = vmatpush2.msra.mxu0 0.0
    %1251 = vmatprep.subr.mxu0 0.0
    %1252 = vmatpush2.msra.mxu0 0.0
    %1253 = vmatprep.subr.mxu0 0.0
    %1254 = vmatpush2.msra.mxu0 0.0
    %1255 = vmatprep.subr.mxu0 0.0
    %1256 = vmatpush2.msra.mxu0 0.0
    %1257 = vmatprep.subr.mxu0 0.0
    %1258 = vmatpush2.msra.mxu0 0.0
    %1259 = vmatprep.subr.mxu0 0.0
    %1260 = vmatpush2.msra.mxu0 0.0
    %1261 = vmatprep.subr.mxu0 0.0
    %1262 = vmatpush2.msra.mxu0 0.0
    %1263 = vmatprep.subr.mxu0 0.0
    %1264 = vmatpush2.msra.mxu0 0.0
    %1265 = vmatprep.subr.mxu0 0.0
    %1266 = vmatpush2.msra.mxu0 0.0
    %1267 = vmatprep.subr.mxu0 0.0
    %1268 = vmatpush2.msra.mxu0 0.0
    %1269 = vmatprep.subr.mxu0 0.0
    %1270 = vmatpush2.msra.mxu0 0.0
    %1271 = vmatprep.subr.mxu0 0.0
    %1272 = vmatpush2.msra.mxu0 0.0
    %1273 = vmatprep.mubr.f32.mxu0 0.0
    %1274 = vmatmul.mubr.f32.gmra.mxu0 %v1207
    %v1275 = vpop.f32.mrf.mxu0
    %v1276 = vadd.f32 0.0, %v1275
    %v1277 = vpop.f32.mrf.mxu0
    %1278 = vdwg.mxu0
    %1279 = vrot.lane.b32.xlu0 %v212, 64
    %v1280 = vpop.permute.xlu0 %1279
    %v1283 = vsel %vm826, %v870, 0
    %1285 = vmatprep.subr.mxu0 0.0
    %1286 = vmatpush1.msra.mxu0 0.0
    %1287 = vmatprep.subr.mxu0 0.0
    %1288 = vmatpush1.msra.mxu0 0.0
    %1289 = vmatprep.subr.mxu0 0.0
    %1290 = vmatpush1.msra.mxu0 0.0
    %1291 = vmatprep.subr.mxu0 0.0
    %1292 = vmatpush1.msra.mxu0 0.0
    %1293 = vmatprep.subr.mxu0 0.0
    %1294 = vmatpush1.msra.mxu0 0.0
    %1295 = vmatprep.subr.mxu0 0.0
    %1296 = vmatpush1.msra.mxu0 0.0
    %1297 = vmatprep.subr.mxu0 0.0
    %1298 = vmatpush1.msra.mxu0 0.0
    %1299 = vmatprep.subr.mxu0 0.0
    %1300 = vmatpush1.msra.mxu0 0.0
    %1301 = vmatprep.subr.mxu0 0.0
    %1302 = vmatpush1.msra.mxu0 0.0
    %1303 = vmatprep.subr.mxu0 0.0
    %1304 = vmatpush1.msra.mxu0 0.0
    %1305 = vmatprep.subr.mxu0 0.0
    %1306 = vmatpush1.msra.mxu0 0.0
    %1307 = vmatprep.subr.mxu0 0.0
    %1308 = vmatpush1.msra.mxu0 0.0
    %1309 = vmatprep.subr.mxu0 0.0
    %1310 = vmatpush1.msra.mxu0 0.0
    %1311 = vmatprep.subr.mxu0 0.0
    %1312 = vmatpush1.msra.mxu0 0.0
    %1313 = vmatprep.subr.mxu0 0.0
    %1314 = vmatpush1.msra.mxu0 0.0
    %1315 = vmatprep.subr.mxu0 0.0
    %1316 = vmatpush1.msra.mxu0 %v1280
    %1317 = vmatprep.subr.mxu0 0.0
    %1318 = vmatpush2.msra.mxu0 0.0
    %1319 = vmatprep.subr.mxu0 0.0
    %1320 = vmatpush2.msra.mxu0 0.0
    %1321 = vmatprep.subr.mxu0 0.0
    %1322 = vmatpush2.msra.mxu0 0.0
    %1323 = vmatprep.subr.mxu0 0.0
    %1324 = vmatpush2.msra.mxu0 0.0
    %1325 = vmatprep.subr.mxu0 0.0
    %1326 = vmatpush2.msra.mxu0 0.0
    %1327 = vmatprep.subr.mxu0 0.0
    %1328 = vmatpush2.msra.mxu0 0.0
    %1329 = vmatprep.subr.mxu0 0.0
    %1330 = vmatpush2.msra.mxu0 0.0
    %1331 = vmatprep.subr.mxu0 0.0
    %1332 = vmatpush2.msra.mxu0 0.0
    %1333 = vmatprep.subr.mxu0 0.0
    %1334 = vmatpush2.msra.mxu0 0.0
    %1335 = vmatprep.subr.mxu0 0.0
    %1336 = vmatpush2.msra.mxu0 0.0
    %1337 = vmatprep.subr.mxu0 0.0
    %1338 = vmatpush2.msra.mxu0 0.0
    %1339 = vmatprep.subr.mxu0 0.0
    %1340 = vmatpush2.msra.mxu0 0.0
    %1341 = vmatprep.subr.mxu0 0.0
    %1342 = vmatpush2.msra.mxu0 0.0
    %1343 = vmatprep.subr.mxu0 0.0
    %1344 = vmatpush2.msra.mxu0 0.0
    %1345 = vmatprep.subr.mxu0 0.0
    %1346 = vmatpush2.msra.mxu0 0.0
    %1347 = vmatprep.subr.mxu0 0.0
    %1348 = vmatpush2.msra.mxu0 0.0
    %1349 = vmatprep.mubr.f32.mxu0 0.0
    %1350 = vmatmul.mubr.f32.gmra.mxu0 %v1283
    %v1351 = vpop.f32.mrf.mxu0
    %v1352 = vadd.f32 0.0, %v1351
    %v1353 = vpop.f32.mrf.mxu0
    %1354 = vdwg.mxu0
    %1355 = vrot.lane.b32.xlu0 %v214, 64
    %v1356 = vpop.permute.xlu0 %1355
    %v1359 = vsel %vm826, %v872, 0
    %1361 = vmatprep.subr.mxu0 0.0
    %1362 = vmatpush1.msra.mxu0 0.0
    %1363 = vmatprep.subr.mxu0 0.0
    %1364 = vmatpush1.msra.mxu0 0.0
    %1365 = vmatprep.subr.mxu0 0.0
    %1366 = vmatpush1.msra.mxu0 0.0
    %1367 = vmatprep.subr.mxu0 0.0
    %1368 = vmatpush1.msra.mxu0 0.0
    %1369 = vmatprep.subr.mxu0 0.0
    %1370 = vmatpush1.msra.mxu0 0.0
    %1371 = vmatprep.subr.mxu0 0.0
    %1372 = vmatpush1.msra.mxu0 0.0
    %1373 = vmatprep.subr.mxu0 0.0
    %1374 = vmatpush1.msra.mxu0 0.0
    %1375 = vmatprep.subr.mxu0 0.0
    %1376 = vmatpush1.msra.mxu0 0.0
    %1377 = vmatprep.subr.mxu0 0.0
    %1378 = vmatpush1.msra.mxu0 0.0
    %1379 = vmatprep.subr.mxu0 0.0
    %1380 = vmatpush1.msra.mxu0 0.0
    %1381 = vmatprep.subr.mxu0 0.0
    %1382 = vmatpush1.msra.mxu0 0.0
    %1383 = vmatprep.subr.mxu0 0.0
    %1384 = vmatpush1.msra.mxu0 0.0
    %1385 = vmatprep.subr.mxu0 0.0
    %1386 = vmatpush1.msra.mxu0 0.0
    %1387 = vmatprep.subr.mxu0 0.0
    %1388 = vmatpush1.msra.mxu0 0.0
    %1389 = vmatprep.subr.mxu0 0.0
    %1390 = vmatpush1.msra.mxu0 0.0
    %1391 = vmatprep.subr.mxu0 0.0
    %1392 = vmatpush1.msra.mxu0 %v1356
    %1393 = vmatprep.subr.mxu0 0.0
    %1394 = vmatpush2.msra.mxu0 0.0
    %1395 = vmatprep.subr.mxu0 0.0
    %1396 = vmatpush2.msra.mxu0 0.0
    %1397 = vmatprep.subr.mxu0 0.0
    %1398 = vmatpush2.msra.mxu0 0.0
    %1399 = vmatprep.subr.mxu0 0.0
    %1400 = vmatpush2.msra.mxu0 0.0
    %1401 = vmatprep.subr.mxu0 0.0
    %1402 = vmatpush2.msra.mxu0 0.0
    %1403 = vmatprep.subr.mxu0 0.0
    %1404 = vmatpush2.msra.mxu0 0.0
    %1405 = vmatprep.subr.mxu0 0.0
    %1406 = vmatpush2.msra.mxu0 0.0
    %1407 = vmatprep.subr.mxu0 0.0
    %1408 = vmatpush2.msra.mxu0 0.0
    %1409 = vmatprep.subr.mxu0 0.0
    %1410 = vmatpush2.msra.mxu0 0.0
    %1411 = vmatprep.subr.mxu0 0.0
    %1412 = vmatpush2.msra.mxu0 0.0
    %1413 = vmatprep.subr.mxu0 0.0
    %1414 = vmatpush2.msra.mxu0 0.0
    %1415 = vmatprep.subr.mxu0 0.0
    %1416 = vmatpush2.msra.mxu0 0.0
    %1417 = vmatprep.subr.mxu0 0.0
    %1418 = vmatpush2.msra.mxu0 0.0
    %1419 = vmatprep.subr.mxu0 0.0
    %1420 = vmatpush2.msra.mxu0 0.0
    %1421 = vmatprep.subr.mxu0 0.0
    %1422 = vmatpush2.msra.mxu0 0.0
    %1423 = vmatprep.subr.mxu0 0.0
    %1424 = vmatpush2.msra.mxu0 0.0
    %1425 = vmatprep.mubr.f32.mxu0 0.0
    %1426 = vmatmul.mubr.f32.gmra.mxu0 %v1359
    %v1427 = vpop.f32.mrf.mxu0
    %v1428 = vadd.f32 0.0, %v1427
    %v1429 = vpop.f32.mrf.mxu0
    %1430 = vdwg.mxu0
    %1431 = vrot.lane.b32.xlu0 %v216, 64
    %v1432 = vpop.permute.xlu0 %1431
    %v1435 = vsel %vm826, %v874, 0
    %1437 = vmatprep.subr.mxu0 0.0
    %1438 = vmatpush1.msra.mxu0 0.0
    %1439 = vmatprep.subr.mxu0 0.0
    %1440 = vmatpush1.msra.mxu0 0.0
    %1441 = vmatprep.subr.mxu0 0.0
    %1442 = vmatpush1.msra.mxu0 0.0
    %1443 = vmatprep.subr.mxu0 0.0
    %1444 = vmatpush1.msra.mxu0 0.0
    %1445 = vmatprep.subr.mxu0 0.0
    %1446 = vmatpush1.msra.mxu0 0.0
    %1447 = vmatprep.subr.mxu0 0.0
    %1448 = vmatpush1.msra.mxu0 0.0
    %1449 = vmatprep.subr.mxu0 0.0
    %1450 = vmatpush1.msra.mxu0 0.0
    %1451 = vmatprep.subr.mxu0 0.0
    %1452 = vmatpush1.msra.mxu0 0.0
    %1453 = vmatprep.subr.mxu0 0.0
    %1454 = vmatpush1.msra.mxu0 0.0
    %1455 = vmatprep.subr.mxu0 0.0
    %1456 = vmatpush1.msra.mxu0 0.0
    %1457 = vmatprep.subr.mxu0 0.0
    %1458 = vmatpush1.msra.mxu0 0.0
    %1459 = vmatprep.subr.mxu0 0.0
    %1460 = vmatpush1.msra.mxu0 0.0
    %1461 = vmatprep.subr.mxu0 0.0
    %1462 = vmatpush1.msra.mxu0 0.0
    %1463 = vmatprep.subr.mxu0 0.0
    %1464 = vmatpush1.msra.mxu0 0.0
    %1465 = vmatprep.subr.mxu0 0.0
    %1466 = vmatpush1.msra.mxu0 0.0
    %1467 = vmatprep.subr.mxu0 0.0
    %1468 = vmatpush1.msra.mxu0 %v1432
    %1469 = vmatprep.subr.mxu0 0.0
    %1470 = vmatpush2.msra.mxu0 0.0
    %1471 = vmatprep.subr.mxu0 0.0
    %1472 = vmatpush2.msra.mxu0 0.0
    %1473 = vmatprep.subr.mxu0 0.0
    %1474 = vmatpush2.msra.mxu0 0.0
    %1475 = vmatprep.subr.mxu0 0.0
    %1476 = vmatpush2.msra.mxu0 0.0
    %1477 = vmatprep.subr.mxu0 0.0
    %1478 = vmatpush2.msra.mxu0 0.0
    %1479 = vmatprep.subr.mxu0 0.0
    %1480 = vmatpush2.msra.mxu0 0.0
    %1481 = vmatprep.subr.mxu0 0.0
    %1482 = vmatpush2.msra.mxu0 0.0
    %1483 = vmatprep.subr.mxu0 0.0
    %1484 = vmatpush2.msra.mxu0 0.0
    %1485 = vmatprep.subr.mxu0 0.0
    %1486 = vmatpush2.msra.mxu0 0.0
    %1487 = vmatprep.subr.mxu0 0.0
    %1488 = vmatpush2.msra.mxu0 0.0
    %1489 = vmatprep.subr.mxu0 0.0
    %1490 = vmatpush2.msra.mxu0 0.0
    %1491 = vmatprep.subr.mxu0 0.0
    %1492 = vmatpush2.msra.mxu0 0.0
    %1493 = vmatprep.subr.mxu0 0.0
    %1494 = vmatpush2.msra.mxu0 0.0
    %1495 = vmatprep.subr.mxu0 0.0
    %1496 = vmatpush2.msra.mxu0 0.0
    %1497 = vmatprep.subr.mxu0 0.0
    %1498 = vmatpush2.msra.mxu0 0.0
    %1499 = vmatprep.subr.mxu0 0.0
    %1500 = vmatpush2.msra.mxu0 0.0
    %1501 = vmatprep.mubr.f32.mxu0 0.0
    %1502 = vmatmul.mubr.f32.gmra.mxu0 %v1435
    %v1503 = vpop.f32.mrf.mxu0
    %v1504 = vadd.f32 0.0, %v1503
    %v1505 = vpop.f32.mrf.mxu0
    %1506 = vdwg.mxu0
    %v1507 = vrcp.pop %v877
    %v1508 = vrcp.pop %v880
    %v1509 = vrcp.pop %v883
    %v1510 = vrcp.pop %v886
    %v1511 = vrcp.pop %v889
    %v1512 = vrcp.pop %v892
    %v1513 = vrcp.pop %v895
    %v1514 = vrcp.pop %v898
    %v1515 = vmul.f32 %v972, %v1507
    %v1516 = vmul.f32 %v1048, %v1508
    %v1517 = vmul.f32 %v1124, %v1509
    %v1518 = vmul.f32 %v1200, %v1510
    %v1519 = vmul.f32 %v1276, %v1511
    %v1520 = vmul.f32 %v1352, %v1512
    %v1521 = vmul.f32 %v1428, %v1513
    %v1522 = vmul.f32 %v1504, %v1514
    %1524 = vrot.lane.b32.xlu0 %v1516, 4
    %v1525 = vpop.permute.xlu0 %1524
    %1528 = vrot.lane.b32.xlu0 %v1517, 8
    %v1529 = vpop.permute.xlu0 %1528
    %1532 = vrot.lane.b32.xlu0 %v1518, 12
    %v1533 = vpop.permute.xlu0 %1532
    %v1535 = vsel %vm219, %v1515, %v1525
    %v1536 = vsel %vm826, %v1535, %v1529
    %vm1537 = vcmask 97280
    %v1538 = vsel %vm1537, %v1536, %v1533
    %1540 = vrot.lane.b32.xlu0 %v1520, 4
    %v1541 = vpop.permute.xlu0 %1540
    %1544 = vrot.lane.b32.xlu0 %v1521, 8
    %v1545 = vpop.permute.xlu0 %1544
    %1548 = vrot.lane.b32.xlu0 %v1522, 12
    %v1549 = vpop.permute.xlu0 %1548
    %v1551 = vsel %vm219, %v1519, %v1541
    %v1552 = vsel %vm826, %v1551, %v1545
    %v1553 = vsel %vm1537, %v1552, %v1549
    %v1554 = vlaneseq
    %v1555 = vshrl.u32 %v1554, 7
    %v1556 = vsub.s32 0, %v1555
    %v1557 = vrot.slane %v47, %v1556
    %v1559 = vsel %vm54, %v1538, 0
    %v1562 = vsel %vm54, %v1553, 0
    %1564 = vmatprep.subr.mxu0 0.0
    %1565 = vmatpush1.msra.mxu0 0.0
    %1566 = vmatprep.subr.mxu0 0.0
    %1567 = vmatpush1.msra.mxu0 0.0
    %1568 = vmatprep.subr.mxu0 0.0
    %1569 = vmatpush1.msra.mxu0 0.0
    %1570 = vmatprep.subr.mxu0 0.0
    %1571 = vmatpush1.msra.mxu0 0.0
    %1572 = vmatprep.subr.mxu0 0.0
    %1573 = vmatpush1.msra.mxu0 0.0
    %1574 = vmatprep.subr.mxu0 0.0
    %1575 = vmatpush1.msra.mxu0 0.0
    %1576 = vmatprep.subr.mxu0 0.0
    %1577 = vmatpush1.msra.mxu0 0.0
    %1578 = vmatprep.subr.mxu0 0.0
    %1579 = vmatpush1.msra.mxu0 0.0
    %1580 = vmatprep.subr.mxu0 0.0
    %1581 = vmatpush1.msra.mxu0 0.0
    %1582 = vmatprep.subr.mxu0 0.0
    %1583 = vmatpush1.msra.mxu0 0.0
    %1584 = vmatprep.subr.mxu0 0.0
    %1585 = vmatpush1.msra.mxu0 0.0
    %1586 = vmatprep.subr.mxu0 0.0
    %1587 = vmatpush1.msra.mxu0 0.0
    %1588 = vmatprep.subr.mxu0 0.0
    %1589 = vmatpush1.msra.mxu0 0.0
    %1590 = vmatprep.subr.mxu0 0.0
    %1591 = vmatpush1.msra.mxu0 0.0
    %1592 = vmatprep.subr.mxu0 0.0
    %1593 = vmatpush1.msra.mxu0 %v46
    %1594 = vmatprep.subr.mxu0 0.0
    %1595 = vmatpush1.msra.mxu0 %v45
    %1596 = vmatprep.subr.mxu0 0.0
    %1597 = vmatpush2.msra.mxu0 0.0
    %1598 = vmatprep.subr.mxu0 0.0
    %1599 = vmatpush2.msra.mxu0 0.0
    %1600 = vmatprep.subr.mxu0 0.0
    %1601 = vmatpush2.msra.mxu0 0.0
    %1602 = vmatprep.subr.mxu0 0.0
    %1603 = vmatpush2.msra.mxu0 0.0
    %1604 = vmatprep.subr.mxu0 0.0
    %1605 = vmatpush2.msra.mxu0 0.0
    %1606 = vmatprep.subr.mxu0 0.0
    %1607 = vmatpush2.msra.mxu0 0.0
    %1608 = vmatprep.subr.mxu0 0.0
    %1609 = vmatpush2.msra.mxu0 0.0
    %1610 = vmatprep.subr.mxu0 0.0
    %1611 = vmatpush2.msra.mxu0 0.0
    %1612 = vmatprep.subr.mxu0 0.0
    %1613 = vmatpush2.msra.mxu0 0.0
    %1614 = vmatprep.subr.mxu0 0.0
    %1615 = vmatpush2.msra.mxu0 0.0
    %1616 = vmatprep.subr.mxu0 0.0
    %1617 = vmatpush2.msra.mxu0 0.0
    %1618 = vmatprep.subr.mxu0 0.0
    %1619 = vmatpush2.msra.mxu0 0.0
    %1620 = vmatprep.subr.mxu0 0.0
    %1621 = vmatpush2.msra.mxu0 0.0
    %1622 = vmatprep.subr.mxu0 0.0
    %1623 = vmatpush2.msra.mxu0 0.0
    %1624 = vmatprep.subr.mxu0 0.0
    %1625 = vmatpush2.msra.mxu0 0.0
    %1626 = vmatprep.subr.mxu0 0.0
    %1627 = vmatpush2.msra.mxu0 0.0
    %1628 = vmatprep.mubr.f32.mxu0 0.0
    %1629 = vmatmul.mubr.f32.gmra.mxu0 %v1559
    %v1630 = vpop.f32.mrf.mxu0
    %v1631 = vadd.f32 %v1557, %v1630
    %v1632 = vpop.f32.mrf.mxu0
    %1633 = vmatprep.mubr.f32.mxu0 0.0
    %1634 = vmatmul.mubr.f32.gmra.mxu0 %v1562
    %v1635 = vpop.f32.mrf.mxu0
    %v1636 = vadd.f32 %v1557, %v1635
    %v1637 = vpop.f32.mrf.mxu0
    %1638 = vdwg.mxu0
    %1639 = vst.msk [vmem:[#allocation7] sm:$0xff] %vm54, %v1631
    %1640 = vst.msk [vmem:[#allocation7 + $0x8] sm:$0xff] %vm54, %v1636
    // Predicated region
    $region18: #{self_attention.1} parent=1 // pred_check
      _
    $region19: #{self_attention.1} parent=1 // pred_check_branch
      %1642 = sbr.rel (0) target = $region21
    $region20: #{self_attention.1} parent=1 // pred_region
      %s1644 = ssub.s32 256, 256
      %1645 = vsyncadd [#allocation4], %s1644
      %s1646 = sshll.u32 [#allocation7], 4
      %s1647 = int_to_ptr.vmem [resolvable:$true] %s1646
      %1652 = dma.vmem_to_hbm [thread:$0]  %s1647, 256, %s2, [#allocation4], 128, 128, 8
    $region21: #{self_attention.1} parent=1 // pred_fallthru
      _
    // Predicated region
    $region22: #{self_attention.1} parent=1 // pred_check
      _
    $region23: #{self_attention.1} parent=1 // pred_check_branch
      %1654 = sbr.rel (0) target = $region25
    $region24: #{self_attention.1} parent=1 // pred_region
      %1655 = dma.done [#allocation4], 256
    $region25: #{self_attention.1} parent=1 // pred_fallthru
      _
    %1656 = vsyncpa [#allocation3], 1
    %1657 = vsyncpa [#allocation6], 1
    %1658 = vsyncpa [#allocation4], 1

</llo_original>
